<compile_context>
chip_gen: v5e
topology: v5e:2x2
jax: 0.10.0
libtpu: 0.0.40
codegen_flags: <defaults>
</compile_context>

<pallas_src>
import numpy as np
import jax
import jax.numpy as jnp
from jax import lax
from jax.experimental import pallas as pl
from jax.experimental.pallas import tpu as pltpu

# ---- config (mirrors args.n_channels / args.img_enc_size) ----
N_CHANNELS = 4
IMG_ENC_SIZE = 32
IN_CH = 3
IMG_HW = 46   # 46 ->conv 44 ->pool 22 ->conv 20 ->pool 10 ->conv 8 ->pool 4  => Flatten = 4*4*C
BATCH = 2

LANE_PAD = 128  # padded lane width of pooled maps / padded conv K dim for layers 2-3


# ----------------------------- Pallas kernel -----------------------------
def imgenc_kernel(x_ref,
                  cw1_ref, bt1_ref, sh1_ref, sw1_ref,
                  cw2_ref, bt2_ref, sh2_ref, sw2_ref,
                  cw3_ref, bt3_ref, sh3_ref, sw3_ref,
                  wc_ref, bc_ref,
                  o_ref):
    bf16 = jnp.bfloat16

    def conv_relu_pool(f_kh, cw_ref, bt_ref, sh_ref, sw_ref):
        # f_kh: three kh-shifted bf16 windows of shape (h_out, K).
        # Conv = 3 banded matmuls (f32 accumulate), bias + ReLU on the VPU, then:
        #   row pool = 1 concatenated selector matmul + max of sublane-aligned halves
        #   col pool = 1 concatenated selector matmul + max of lane-aligned halves
        y = (jnp.dot(f_kh[0], cw_ref[0], preferred_element_type=jnp.float32)
             + jnp.dot(f_kh[1], cw_ref[1], preferred_element_type=jnp.float32)
             + jnp.dot(f_kh[2], cw_ref[2], preferred_element_type=jnp.float32))
        y = jnp.maximum(y + bt_ref[...], 0.0).astype(bf16)            # (h_out, w_out*C)
        h2p = sh_ref.shape[0] // 2
        gg = jnp.dot(sh_ref[...], y, preferred_element_type=jnp.float32)
        g = jnp.maximum(gg[:h2p, :], gg[h2p:, :]).astype(bf16)        # (h2p, w_out*C)
        w2p = sw_ref.shape[1] // 2
        pp = jnp.dot(g, sw_ref[...], preferred_element_type=jnp.float32)
        return jnp.maximum(pp[:, :w2p], pp[:, w2p:])                  # f32 (h2p, w2p), padding stays 0

    # ---- layer 1: read the three kh-shifted windows straight from the VMEM ref ----
    h_out1 = x_ref.shape[1] - 2
    f1 = [x_ref[0, kh:kh + h_out1, :] for kh in range(3)]
    p1 = conv_relu_pool(f1, cw1_ref, bt1_ref, sh1_ref, sw1_ref)       # (24,128) valid (22, 88)

    h_out2 = sh2_ref.shape[1]
    f2 = [p1[kh:kh + h_out2, :].astype(bf16) for kh in range(3)]
    p2 = conv_relu_pool(f2, cw2_ref, bt2_ref, sh2_ref, sw2_ref)       # (16,128) valid (10, 40)

    h_out3 = sh3_ref.shape[1]
    f3 = [p2[kh:kh + h_out3, :].astype(bf16) for kh in range(3)]
    p3 = conv_relu_pool(f3, cw3_ref, bt3_ref, sh3_ref, sw3_ref)       # (8,128) valid (4, 16)

    # ---- fused Linear(64,E) o Linear(E,E): one matmul + diagonal-block reduce ----
    E = o_ref.shape[-1]
    ep = jnp.dot(p3.astype(bf16), wc_ref[...], preferred_element_type=jnp.float32)  # (8, 4*E)
    e = (bc_ref[...]
         + ep[0:1, 0 * E:1 * E] + ep[1:2, 1 * E:2 * E]
         + ep[2:3, 2 * E:3 * E] + ep[3:4, 3 * E:4 * E])
    o_ref[0] = e


def img_enc_forward(x_nchw, plist):
    B, c_in, H, W = x_nchw.shape
    # layout plumbing + bf16 cast in the wrapper; compute stays in the kernel
    x2 = jnp.transpose(x_nchw, (0, 2, 3, 1)).reshape(B, H, W * c_in).astype(jnp.bfloat16)

    in_specs = [pl.BlockSpec((1, H, W * c_in), lambda b: (b, 0, 0))]
    for p in plist:
        in_specs.append(
            pl.BlockSpec(p.shape, (lambda nd: (lambda b: (0,) * nd))(p.ndim)))

    out = pl.pallas_call(
        imgenc_kernel,
        out_shape=jax.ShapeDtypeStruct((B, 1, IMG_ENC_SIZE), jnp.float32),
        grid=(B,),
        in_specs=in_specs,
        out_specs=pl.BlockSpec((1, 1, IMG_ENC_SIZE), lambda b: (b, 0, 0)),
        # distinct output block per grid step -> safe; lets v7x run the 2 images on its 2 TCs
        compiler_params=pltpu.CompilerParams(dimension_semantics=("parallel",)),
    )(x2, *plist)
    return out.reshape(B, IMG_ENC_SIZE)


# ----------------------------- parameter construction (glue) -----------------------------
def conv_layer_mats(weight, bias, w_in, k_pad):
    """PyTorch Conv2d weight (Cout,Cin,3,3) -> banded matmul mats (K padded to k_pad) + tiled bias."""
    cout, cin, _, _ = weight.shape
    w_out = w_in - 2
    M = np.zeros((3, k_pad, w_out * cout), np.float32)
    for kh in range(3):
        for kw in range(3):
            wk = weight[:, :, kh, kw].T                      # (cin, cout)
            for w in range(w_out):
                M[kh, (w + kw) * cin:(w + kw) * cin + cin, w * cout:(w + 1) * cout] += wk
    bt = np.tile(bias, w_out)[None, :].astype(np.float32)    # (1, w_out*cout)
    return M, bt


def pool_mats(h_out, w_out, cout, h2p, w2cp):
    """Concatenated even|odd selectors: one matmul per pooling axis, max of aligned halves."""
    h2, w2 = h_out // 2, w_out // 2
    SH = np.zeros((2 * h2p, h_out), np.float32)
    for i in range(h2):
        SH[i, 2 * i] = 1.0
        SH[h2p + i, 2 * i + 1] = 1.0
    SW = np.zeros((w_out * cout, 2 * w2cp), np.float32)
    for j in range(w2):
        for c in range(cout):
            SW[(2 * j) * cout + c, j * cout + c] = 1.0
            SW[(2 * j + 1) * cout + c, w2cp + j * cout + c] = 1.0
    return SH, SW


def fused_fc_mats(fc1_w, fc1_b, fc2_w, fc2_b, k_pad):
    """Compose Linear(64,E) and Linear(E,E) (no nonlinearity between) into one affine map.
    Rows are permuted from PyTorch NCHW-flatten order to the kernel's (h, w, c) order and
    laid out per pooled row h into columns [h*E, (h+1)*E)."""
    C, E = N_CHANNELS, IMG_ENC_SIZE
    w2t = fc2_w.T                                            # (E, E), right-multiply form
    Wc = np.zeros((k_pad, 4 * E), np.float32)
    for h in range(4):
        W1p_h = np.zeros((4 * C, E), np.float32)
        for w in range(4):
            for c in range(C):
                W1p_h[w * C + c, :] = fc1_w[:, c * 16 + h * 4 + w]
        Wc[:4 * C, h * E:(h + 1) * E] = W1p_h @ w2t
    bc = (fc1_b @ w2t + fc2_b)[None, :].astype(np.float32)   # (1, E)
    return Wc, bc


def build_kernel_params(conv_ws, conv_bs, fc1_w, fc1_b, fc2_w, fc2_b):
    layer_cfg = [(IMG_HW, IMG_HW * IN_CH), (22, LANE_PAD), (10, LANE_PAD)]   # (W_in, K_pad)
    plist = []
    for (w, b), (w_in, k_pad) in zip(zip(conv_ws, conv_bs), layer_cfg):
        h_out = w_in - 2
        h2p = -(-(h_out // 2) // 8) * 8                       # round h2 up to multiple of 8
        M, bt = conv_layer_mats(w, b, w_in, k_pad)
        SH, SW = pool_mats(h_out, h_out, w.shape[0], h2p, LANE_PAD)
        plist += [jnp.asarray(M, jnp.bfloat16), jnp.asarray(bt, jnp.float32),
                  jnp.asarray(SH, jnp.bfloat16), jnp.asarray(SW, jnp.bfloat16)]
    Wc, bc = fused_fc_mats(fc1_w, fc1_b, fc2_w, fc2_b, LANE_PAD)
    plist += [jnp.asarray(Wc, jnp.bfloat16), jnp.asarray(bc, jnp.float32)]
    return plist


def build_torch_style_params():
    rng = np.random.default_rng(0)
    chans = [(IN_CH, N_CHANNELS), (N_CHANNELS, N_CHANNELS), (N_CHANNELS, N_CHANNELS)]
    conv_ws, conv_bs = [], []
    for cin, cout in chans:
        conv_ws.append((rng.normal(size=(cout, cin, 3, 3)) * 0.1).astype(np.float32))
        conv_bs.append((rng.normal(size=(cout,)) * 0.1).astype(np.float32))
    fc1_w = (rng.normal(size=(IMG_ENC_SIZE, 4 * 4 * N_CHANNELS)) * 0.1).astype(np.float32)
    fc1_b = (rng.normal(size=(IMG_ENC_SIZE,)) * 0.1).astype(np.float32)
    fc2_w = (rng.normal(size=(IMG_ENC_SIZE, IMG_ENC_SIZE)) * 0.1).astype(np.float32)
    fc2_b = (rng.normal(size=(IMG_ENC_SIZE,)) * 0.1).astype(np.float32)
    return conv_ws, conv_bs, fc1_w, fc1_b, fc2_w, fc2_b


# ----------------------------- pure-JAX reference (PyTorch semantics, f32) -----------------------------
def ref_forward(x, conv_ws, conv_bs, fc1_w, fc1_b, fc2_w, fc2_b):
    y = x
    for w, b in zip(conv_ws, conv_bs):
        y = lax.conv_general_dilated(y, jnp.asarray(w), (1, 1), "VALID",
                                     dimension_numbers=("NCHW", "OIHW", "NCHW"))
        y = jnp.maximum(y + jnp.asarray(b)[None, :, None, None], 0.0)
        Bq, Cq, Hq, Wq = y.shape
        y = y.reshape(Bq, Cq, Hq // 2, 2, Wq // 2, 2).max(axis=(3, 5))
    y = y.reshape(y.shape[0], -1)                     # NCHW flatten, like nn.Flatten
    y = y @ jnp.asarray(fc1_w).T + jnp.asarray(fc1_b)
    y = y @ jnp.asarray(fc2_w).T + jnp.asarray(fc2_b)
    return y


if __name__ == "__main__":
    # deterministic input and parameters
    x = jax.random.normal(jax.random.PRNGKey(0), (BATCH, IN_CH, IMG_HW, IMG_HW), jnp.float32)
    conv_ws, conv_bs, fc1_w, fc1_b, fc2_w, fc2_b = build_torch_style_params()
    plist = build_kernel_params(conv_ws, conv_bs, fc1_w, fc1_b, fc2_w, fc2_b)

    out = jax.jit(img_enc_forward)(x, plist)
    out = jax.block_until_ready(out)

    ref = ref_forward(x, conv_ws, conv_bs, fc1_w, fc1_b, fc2_w, fc2_b)
    assert out.shape == (BATCH, IMG_ENC_SIZE)
    assert jnp.allclose(out, ref, rtol=1e-2, atol=1e-2), (
        f"mismatch: max abs err {float(jnp.max(jnp.abs(out - ref)))}")
    print("KERNEL_OK")
</pallas_src>

<mosaic_0001>
module attributes {stable_mosaic.version = 11 : i64} {
  func.func @imgenc_kernel(%arg0: i32, %arg1: memref<1x46x138xbf16, #tpu.memory_space<vmem>>, %arg2: memref<3x138x176xbf16, #tpu.memory_space<vmem>>, %arg3: memref<1x176xf32, #tpu.memory_space<vmem>>, %arg4: memref<48x44xbf16, #tpu.memory_space<vmem>>, %arg5: memref<176x256xbf16, #tpu.memory_space<vmem>>, %arg6: memref<3x128x80xbf16, #tpu.memory_space<vmem>>, %arg7: memref<1x80xf32, #tpu.memory_space<vmem>>, %arg8: memref<32x20xbf16, #tpu.memory_space<vmem>>, %arg9: memref<80x256xbf16, #tpu.memory_space<vmem>>, %arg10: memref<3x128x32xbf16, #tpu.memory_space<vmem>>, %arg11: memref<1x32xf32, #tpu.memory_space<vmem>>, %arg12: memref<16x8xbf16, #tpu.memory_space<vmem>>, %arg13: memref<32x256xbf16, #tpu.memory_space<vmem>>, %arg14: memref<128x128xbf16, #tpu.memory_space<vmem>>, %arg15: memref<1x32xf32, #tpu.memory_space<vmem>>, %arg16: memref<1x1x32xf32, #tpu.memory_space<vmem>>) attributes {dimension_semantics = [#tpu.dimension_semantics<parallel>], iteration_bounds = array<i64: 2>, scalar_prefetch = 0 : i64, scratch_operands = 0 : i64, tpu.core_type = #tpu.core_type<tc>, window_params = [{transform_indices = @transform_0, window_bounds = array<i64: 1, 46, 138>}, {pipeline_mode = #tpu.pipeline_mode<synchronous>, transform_indices = @transform_1, window_bounds = array<i64: 3, 138, 176>}, {pipeline_mode = #tpu.pipeline_mode<synchronous>, transform_indices = @transform_2, window_bounds = array<i64: 1, 176>}, {pipeline_mode = #tpu.pipeline_mode<synchronous>, transform_indices = @transform_3, window_bounds = array<i64: 48, 44>}, {pipeline_mode = #tpu.pipeline_mode<synchronous>, transform_indices = @transform_4, window_bounds = array<i64: 176, 256>}, {pipeline_mode = #tpu.pipeline_mode<synchronous>, transform_indices = @transform_5, window_bounds = array<i64: 3, 128, 80>}, {pipeline_mode = #tpu.pipeline_mode<synchronous>, transform_indices = @transform_6, window_bounds = array<i64: 1, 80>}, {pipeline_mode = #tpu.pipeline_mode<synchronous>, transform_indices = @transform_7, window_bounds = array<i64: 32, 20>}, {pipeline_mode = #tpu.pipeline_mode<synchronous>, transform_indices = @transform_8, window_bounds = array<i64: 80, 256>}, {pipeline_mode = #tpu.pipeline_mode<synchronous>, transform_indices = @transform_9, window_bounds = array<i64: 3, 128, 32>}, {pipeline_mode = #tpu.pipeline_mode<synchronous>, transform_indices = @transform_10, window_bounds = array<i64: 1, 32>}, {pipeline_mode = #tpu.pipeline_mode<synchronous>, transform_indices = @transform_11, window_bounds = array<i64: 16, 8>}, {pipeline_mode = #tpu.pipeline_mode<synchronous>, transform_indices = @transform_12, window_bounds = array<i64: 32, 256>}, {pipeline_mode = #tpu.pipeline_mode<synchronous>, transform_indices = @transform_13, window_bounds = array<i64: 128, 128>}, {pipeline_mode = #tpu.pipeline_mode<synchronous>, transform_indices = @transform_14, window_bounds = array<i64: 1, 32>}, {transform_indices = @transform_15, window_bounds = array<i64: 1, 1, 32>}]} {
    %c0 = arith.constant 0 : index
    %c0_0 = arith.constant 0 : index
    %c0_1 = arith.constant 0 : index
    %0 = vector.load %arg1[%c0, %c0_0, %c0_1] : memref<1x46x138xbf16, #tpu.memory_space<vmem>>, vector<1x44x138xbf16>
    %1 = vector.shape_cast %0 : vector<1x44x138xbf16> to vector<44x138xbf16>
    %c0_2 = arith.constant 0 : index
    %c1 = arith.constant 1 : index
    %c0_3 = arith.constant 0 : index
    %2 = vector.load %arg1[%c0_2, %c1, %c0_3] : memref<1x46x138xbf16, #tpu.memory_space<vmem>>, vector<1x44x138xbf16>
    %3 = vector.shape_cast %2 : vector<1x44x138xbf16> to vector<44x138xbf16>
    %c0_4 = arith.constant 0 : index
    %c2 = arith.constant 2 : index
    %c0_5 = arith.constant 0 : index
    %4 = vector.load %arg1[%c0_4, %c2, %c0_5] : memref<1x46x138xbf16, #tpu.memory_space<vmem>>, vector<1x44x138xbf16>
    %5 = vector.shape_cast %4 : vector<1x44x138xbf16> to vector<44x138xbf16>
    %c0_6 = arith.constant 0 : index
    %c0_7 = arith.constant 0 : index
    %c0_8 = arith.constant 0 : index
    %6 = vector.load %arg2[%c0_6, %c0_7, %c0_8] : memref<3x138x176xbf16, #tpu.memory_space<vmem>>, vector<1x138x176xbf16>
    %7 = vector.shape_cast %6 : vector<1x138x176xbf16> to vector<138x176xbf16>
    %cst = arith.constant dense<0.000000e+00> : vector<44x176xf32>
    %8 = tpu.matmul %1, %7, %cst {dimension_numbers = #tpu.dot_dimension_numbers<[1], [0], [0], [1], [0, 0, 1, 1], [], []>} : vector<44x138xbf16>, vector<138x176xbf16>, vector<44x176xf32> -> vector<44x176xf32>
    %c1_9 = arith.constant 1 : index
    %c0_10 = arith.constant 0 : index
    %c0_11 = arith.constant 0 : index
    %9 = vector.load %arg2[%c1_9, %c0_10, %c0_11] : memref<3x138x176xbf16, #tpu.memory_space<vmem>>, vector<1x138x176xbf16>
    %10 = vector.shape_cast %9 : vector<1x138x176xbf16> to vector<138x176xbf16>
    %cst_12 = arith.constant dense<0.000000e+00> : vector<44x176xf32>
    %11 = tpu.matmul %3, %10, %cst_12 {dimension_numbers = #tpu.dot_dimension_numbers<[1], [0], [0], [1], [0, 0, 1, 1], [], []>} : vector<44x138xbf16>, vector<138x176xbf16>, vector<44x176xf32> -> vector<44x176xf32>
    %12 = arith.addf %8, %11 : vector<44x176xf32>
    %c2_13 = arith.constant 2 : index
    %c0_14 = arith.constant 0 : index
    %c0_15 = arith.constant 0 : index
    %13 = vector.load %arg2[%c2_13, %c0_14, %c0_15] : memref<3x138x176xbf16, #tpu.memory_space<vmem>>, vector<1x138x176xbf16>
    %14 = vector.shape_cast %13 : vector<1x138x176xbf16> to vector<138x176xbf16>
    %cst_16 = arith.constant dense<0.000000e+00> : vector<44x176xf32>
    %15 = tpu.matmul %5, %14, %cst_16 {dimension_numbers = #tpu.dot_dimension_numbers<[1], [0], [0], [1], [0, 0, 1, 1], [], []>} : vector<44x138xbf16>, vector<138x176xbf16>, vector<44x176xf32> -> vector<44x176xf32>
    %16 = arith.addf %12, %15 : vector<44x176xf32>
    %c0_17 = arith.constant 0 : index
    %c0_18 = arith.constant 0 : index
    %17 = vector.load %arg3[%c0_17, %c0_18] : memref<1x176xf32, #tpu.memory_space<vmem>>, vector<1x176xf32>
    %18 = vector.broadcast %17 : vector<1x176xf32> to vector<44x176xf32>
    %19 = arith.addf %16, %18 : vector<44x176xf32>
    %cst_19 = arith.constant 0.000000e+00 : f32
    %20 = vector.broadcast %cst_19 : f32 to vector<44x176xf32>
    %21 = arith.maximumf %19, %20 : vector<44x176xf32>
    %22 = arith.truncf %21 : vector<44x176xf32> to vector<44x176xbf16>
    %c0_20 = arith.constant 0 : index
    %c0_21 = arith.constant 0 : index
    %23 = vector.load %arg4[%c0_20, %c0_21] : memref<48x44xbf16, #tpu.memory_space<vmem>>, vector<48x44xbf16>
    %cst_22 = arith.constant dense<0.000000e+00> : vector<48x176xf32>
    %24 = tpu.matmul %23, %22, %cst_22 {dimension_numbers = #tpu.dot_dimension_numbers<[1], [0], [0], [1], [0, 0, 1, 1], [], []>} : vector<48x44xbf16>, vector<44x176xbf16>, vector<48x176xf32> -> vector<48x176xf32>
    %25 = vector.extract_strided_slice %24 {offsets = [0, 0], sizes = [24, 176], strides = [1, 1]} : vector<48x176xf32> to vector<24x176xf32>
    %26 = vector.extract_strided_slice %24 {offsets = [24, 0], sizes = [24, 176], strides = [1, 1]} : vector<48x176xf32> to vector<24x176xf32>
    %27 = arith.maximumf %25, %26 : vector<24x176xf32>
    %28 = arith.truncf %27 : vector<24x176xf32> to vector<24x176xbf16>
    %c0_23 = arith.constant 0 : index
    %c0_24 = arith.constant 0 : index
    %29 = vector.load %arg5[%c0_23, %c0_24] : memref<176x256xbf16, #tpu.memory_space<vmem>>, vector<176x256xbf16>
    %cst_25 = arith.constant dense<0.000000e+00> : vector<24x256xf32>
    %30 = tpu.matmul %28, %29, %cst_25 {dimension_numbers = #tpu.dot_dimension_numbers<[1], [0], [0], [1], [0, 0, 1, 1], [], []>} : vector<24x176xbf16>, vector<176x256xbf16>, vector<24x256xf32> -> vector<24x256xf32>
    %31 = vector.extract_strided_slice %30 {offsets = [0, 0], sizes = [24, 128], strides = [1, 1]} : vector<24x256xf32> to vector<24x128xf32>
    %32 = vector.extract_strided_slice %30 {offsets = [0, 128], sizes = [24, 128], strides = [1, 1]} : vector<24x256xf32> to vector<24x128xf32>
    %33 = arith.maximumf %31, %32 : vector<24x128xf32>
    %34 = vector.extract_strided_slice %33 {offsets = [0, 0], sizes = [20, 128], strides = [1, 1]} : vector<24x128xf32> to vector<20x128xf32>
    %35 = arith.truncf %34 : vector<20x128xf32> to vector<20x128xbf16>
    %36 = vector.extract_strided_slice %33 {offsets = [1, 0], sizes = [20, 128], strides = [1, 1]} : vector<24x128xf32> to vector<20x128xf32>
    %37 = arith.truncf %36 : vector<20x128xf32> to vector<20x128xbf16>
    %38 = vector.extract_strided_slice %33 {offsets = [2, 0], sizes = [20, 128], strides = [1, 1]} : vector<24x128xf32> to vector<20x128xf32>
    %39 = arith.truncf %38 : vector<20x128xf32> to vector<20x128xbf16>
    %c0_26 = arith.constant 0 : index
    %c0_27 = arith.constant 0 : index
    %c0_28 = arith.constant 0 : index
    %40 = vector.load %arg6[%c0_26, %c0_27, %c0_28] : memref<3x128x80xbf16, #tpu.memory_space<vmem>>, vector<1x128x80xbf16>
    %41 = vector.shape_cast %40 : vector<1x128x80xbf16> to vector<128x80xbf16>
    %cst_29 = arith.constant dense<0.000000e+00> : vector<20x80xf32>
    %42 = tpu.matmul %35, %41, %cst_29 {dimension_numbers = #tpu.dot_dimension_numbers<[1], [0], [0], [1], [0, 0, 1, 1], [], []>} : vector<20x128xbf16>, vector<128x80xbf16>, vector<20x80xf32> -> vector<20x80xf32>
    %c1_30 = arith.constant 1 : index
    %c0_31 = arith.constant 0 : index
    %c0_32 = arith.constant 0 : index
    %43 = vector.load %arg6[%c1_30, %c0_31, %c0_32] : memref<3x128x80xbf16, #tpu.memory_space<vmem>>, vector<1x128x80xbf16>
    %44 = vector.shape_cast %43 : vector<1x128x80xbf16> to vector<128x80xbf16>
    %cst_33 = arith.constant dense<0.000000e+00> : vector<20x80xf32>
    %45 = tpu.matmul %37, %44, %cst_33 {dimension_numbers = #tpu.dot_dimension_numbers<[1], [0], [0], [1], [0, 0, 1, 1], [], []>} : vector<20x128xbf16>, vector<128x80xbf16>, vector<20x80xf32> -> vector<20x80xf32>
    %46 = arith.addf %42, %45 : vector<20x80xf32>
    %c2_34 = arith.constant 2 : index
    %c0_35 = arith.constant 0 : index
    %c0_36 = arith.constant 0 : index
    %47 = vector.load %arg6[%c2_34, %c0_35, %c0_36] : memref<3x128x80xbf16, #tpu.memory_space<vmem>>, vector<1x128x80xbf16>
    %48 = vector.shape_cast %47 : vector<1x128x80xbf16> to vector<128x80xbf16>
    %cst_37 = arith.constant dense<0.000000e+00> : vector<20x80xf32>
    %49 = tpu.matmul %39, %48, %cst_37 {dimension_numbers = #tpu.dot_dimension_numbers<[1], [0], [0], [1], [0, 0, 1, 1], [], []>} : vector<20x128xbf16>, vector<128x80xbf16>, vector<20x80xf32> -> vector<20x80xf32>
    %50 = arith.addf %46, %49 : vector<20x80xf32>
    %c0_38 = arith.constant 0 : index
    %c0_39 = arith.constant 0 : index
    %51 = vector.load %arg7[%c0_38, %c0_39] : memref<1x80xf32, #tpu.memory_space<vmem>>, vector<1x80xf32>
    %52 = vector.broadcast %51 : vector<1x80xf32> to vector<20x80xf32>
    %53 = arith.addf %50, %52 : vector<20x80xf32>
    %cst_40 = arith.constant 0.000000e+00 : f32
    %54 = vector.broadcast %cst_40 : f32 to vector<20x80xf32>
    %55 = arith.maximumf %53, %54 : vector<20x80xf32>
    %56 = arith.truncf %55 : vector<20x80xf32> to vector<20x80xbf16>
    %c0_41 = arith.constant 0 : index
    %c0_42 = arith.constant 0 : index
    %57 = vector.load %arg8[%c0_41, %c0_42] : memref<32x20xbf16, #tpu.memory_space<vmem>>, vector<32x20xbf16>
    %cst_43 = arith.constant dense<0.000000e+00> : vector<32x80xf32>
    %58 = tpu.matmul %57, %56, %cst_43 {dimension_numbers = #tpu.dot_dimension_numbers<[1], [0], [0], [1], [0, 0, 1, 1], [], []>} : vector<32x20xbf16>, vector<20x80xbf16>, vector<32x80xf32> -> vector<32x80xf32>
    %59 = vector.extract_strided_slice %58 {offsets = [0, 0], sizes = [16, 80], strides = [1, 1]} : vector<32x80xf32> to vector<16x80xf32>
    %60 = vector.extract_strided_slice %58 {offsets = [16, 0], sizes = [16, 80], strides = [1, 1]} : vector<32x80xf32> to vector<16x80xf32>
    %61 = arith.maximumf %59, %60 : vector<16x80xf32>
    %62 = arith.truncf %61 : vector<16x80xf32> to vector<16x80xbf16>
    %c0_44 = arith.constant 0 : index
    %c0_45 = arith.constant 0 : index
    %63 = vector.load %arg9[%c0_44, %c0_45] : memref<80x256xbf16, #tpu.memory_space<vmem>>, vector<80x256xbf16>
    %cst_46 = arith.constant dense<0.000000e+00> : vector<16x256xf32>
    %64 = tpu.matmul %62, %63, %cst_46 {dimension_numbers = #tpu.dot_dimension_numbers<[1], [0], [0], [1], [0, 0, 1, 1], [], []>} : vector<16x80xbf16>, vector<80x256xbf16>, vector<16x256xf32> -> vector<16x256xf32>
    %65 = vector.extract_strided_slice %64 {offsets = [0, 0], sizes = [16, 128], strides = [1, 1]} : vector<16x256xf32> to vector<16x128xf32>
    %66 = vector.extract_strided_slice %64 {offsets = [0, 128], sizes = [16, 128], strides = [1, 1]} : vector<16x256xf32> to vector<16x128xf32>
    %67 = arith.maximumf %65, %66 : vector<16x128xf32>
    %68 = vector.extract_strided_slice %67 {offsets = [0, 0], sizes = [8, 128], strides = [1, 1]} : vector<16x128xf32> to vector<8x128xf32>
    %69 = arith.truncf %68 : vector<8x128xf32> to vector<8x128xbf16>
    %70 = vector.extract_strided_slice %67 {offsets = [1, 0], sizes = [8, 128], strides = [1, 1]} : vector<16x128xf32> to vector<8x128xf32>
    %71 = arith.truncf %70 : vector<8x128xf32> to vector<8x128xbf16>
    %72 = vector.extract_strided_slice %67 {offsets = [2, 0], sizes = [8, 128], strides = [1, 1]} : vector<16x128xf32> to vector<8x128xf32>
    %73 = arith.truncf %72 : vector<8x128xf32> to vector<8x128xbf16>
    %c0_47 = arith.constant 0 : index
    %c0_48 = arith.constant 0 : index
    %c0_49 = arith.constant 0 : index
    %74 = vector.load %arg10[%c0_47, %c0_48, %c0_49] : memref<3x128x32xbf16, #tpu.memory_space<vmem>>, vector<1x128x32xbf16>
    %75 = vector.shape_cast %74 : vector<1x128x32xbf16> to vector<128x32xbf16>
    %cst_50 = arith.constant dense<0.000000e+00> : vector<8x32xf32>
    %76 = tpu.matmul %69, %75, %cst_50 {dimension_numbers = #tpu.dot_dimension_numbers<[1], [0], [0], [1], [0, 0, 1, 1], [], []>} : vector<8x128xbf16>, vector<128x32xbf16>, vector<8x32xf32> -> vector<8x32xf32>
    %c1_51 = arith.constant 1 : index
    %c0_52 = arith.constant 0 : index
    %c0_53 = arith.constant 0 : index
    %77 = vector.load %arg10[%c1_51, %c0_52, %c0_53] : memref<3x128x32xbf16, #tpu.memory_space<vmem>>, vector<1x128x32xbf16>
    %78 = vector.shape_cast %77 : vector<1x128x32xbf16> to vector<128x32xbf16>
    %cst_54 = arith.constant dense<0.000000e+00> : vector<8x32xf32>
    %79 = tpu.matmul %71, %78, %cst_54 {dimension_numbers = #tpu.dot_dimension_numbers<[1], [0], [0], [1], [0, 0, 1, 1], [], []>} : vector<8x128xbf16>, vector<128x32xbf16>, vector<8x32xf32> -> vector<8x32xf32>
    %80 = arith.addf %76, %79 : vector<8x32xf32>
    %c2_55 = arith.constant 2 : index
    %c0_56 = arith.constant 0 : index
    %c0_57 = arith.constant 0 : index
    %81 = vector.load %arg10[%c2_55, %c0_56, %c0_57] : memref<3x128x32xbf16, #tpu.memory_space<vmem>>, vector<1x128x32xbf16>
    %82 = vector.shape_cast %81 : vector<1x128x32xbf16> to vector<128x32xbf16>
    %cst_58 = arith.constant dense<0.000000e+00> : vector<8x32xf32>
    %83 = tpu.matmul %73, %82, %cst_58 {dimension_numbers = #tpu.dot_dimension_numbers<[1], [0], [0], [1], [0, 0, 1, 1], [], []>} : vector<8x128xbf16>, vector<128x32xbf16>, vector<8x32xf32> -> vector<8x32xf32>
    %84 = arith.addf %80, %83 : vector<8x32xf32>
    %c0_59 = arith.constant 0 : index
    %c0_60 = arith.constant 0 : index
    %85 = vector.load %arg11[%c0_59, %c0_60] : memref<1x32xf32, #tpu.memory_space<vmem>>, vector<1x32xf32>
    %86 = vector.broadcast %85 : vector<1x32xf32> to vector<8x32xf32>
    %87 = arith.addf %84, %86 : vector<8x32xf32>
    %cst_61 = arith.constant 0.000000e+00 : f32
    %88 = vector.broadcast %cst_61 : f32 to vector<8x32xf32>
    %89 = arith.maximumf %87, %88 : vector<8x32xf32>
    %90 = arith.truncf %89 : vector<8x32xf32> to vector<8x32xbf16>
    %c0_62 = arith.constant 0 : index
    %c0_63 = arith.constant 0 : index
    %91 = vector.load %arg12[%c0_62, %c0_63] : memref<16x8xbf16, #tpu.memory_space<vmem>>, vector<16x8xbf16>
    %cst_64 = arith.constant dense<0.000000e+00> : vector<16x32xf32>
    %92 = tpu.matmul %91, %90, %cst_64 {dimension_numbers = #tpu.dot_dimension_numbers<[1], [0], [0], [1], [0, 0, 1, 1], [], []>} : vector<16x8xbf16>, vector<8x32xbf16>, vector<16x32xf32> -> vector<16x32xf32>
    %93 = vector.extract_strided_slice %92 {offsets = [0, 0], sizes = [8, 32], strides = [1, 1]} : vector<16x32xf32> to vector<8x32xf32>
    %94 = vector.extract_strided_slice %92 {offsets = [8, 0], sizes = [8, 32], strides = [1, 1]} : vector<16x32xf32> to vector<8x32xf32>
    %95 = arith.maximumf %93, %94 : vector<8x32xf32>
    %96 = arith.truncf %95 : vector<8x32xf32> to vector<8x32xbf16>
    %c0_65 = arith.constant 0 : index
    %c0_66 = arith.constant 0 : index
    %97 = vector.load %arg13[%c0_65, %c0_66] : memref<32x256xbf16, #tpu.memory_space<vmem>>, vector<32x256xbf16>
    %cst_67 = arith.constant dense<0.000000e+00> : vector<8x256xf32>
    %98 = tpu.matmul %96, %97, %cst_67 {dimension_numbers = #tpu.dot_dimension_numbers<[1], [0], [0], [1], [0, 0, 1, 1], [], []>} : vector<8x32xbf16>, vector<32x256xbf16>, vector<8x256xf32> -> vector<8x256xf32>
    %99 = vector.extract_strided_slice %98 {offsets = [0, 0], sizes = [8, 128], strides = [1, 1]} : vector<8x256xf32> to vector<8x128xf32>
    %100 = vector.extract_strided_slice %98 {offsets = [0, 128], sizes = [8, 128], strides = [1, 1]} : vector<8x256xf32> to vector<8x128xf32>
    %101 = arith.maximumf %99, %100 : vector<8x128xf32>
    %102 = arith.truncf %101 : vector<8x128xf32> to vector<8x128xbf16>
    %c0_68 = arith.constant 0 : index
    %c0_69 = arith.constant 0 : index
    %103 = vector.load %arg14[%c0_68, %c0_69] : memref<128x128xbf16, #tpu.memory_space<vmem>>, vector<128x128xbf16>
    %cst_70 = arith.constant dense<0.000000e+00> : vector<8x128xf32>
    %104 = tpu.matmul %102, %103, %cst_70 {dimension_numbers = #tpu.dot_dimension_numbers<[1], [0], [0], [1], [0, 0, 1, 1], [], []>} : vector<8x128xbf16>, vector<128x128xbf16>, vector<8x128xf32> -> vector<8x128xf32>
    %c0_71 = arith.constant 0 : index
    %c0_72 = arith.constant 0 : index
    %105 = vector.load %arg15[%c0_71, %c0_72] : memref<1x32xf32, #tpu.memory_space<vmem>>, vector<1x32xf32>
    %106 = vector.extract_strided_slice %104 {offsets = [0, 0], sizes = [1, 32], strides = [1, 1]} : vector<8x128xf32> to vector<1x32xf32>
    %107 = arith.addf %105, %106 : vector<1x32xf32>
    %108 = vector.extract_strided_slice %104 {offsets = [1, 32], sizes = [1, 32], strides = [1, 1]} : vector<8x128xf32> to vector<1x32xf32>
    %109 = arith.addf %107, %108 : vector<1x32xf32>
    %110 = vector.extract_strided_slice %104 {offsets = [2, 64], sizes = [1, 32], strides = [1, 1]} : vector<8x128xf32> to vector<1x32xf32>
    %111 = arith.addf %109, %110 : vector<1x32xf32>
    %112 = vector.extract_strided_slice %104 {offsets = [3, 96], sizes = [1, 32], strides = [1, 1]} : vector<8x128xf32> to vector<1x32xf32>
    %113 = arith.addf %111, %112 : vector<1x32xf32>
    %c0_73 = arith.constant 0 : index
    %c0_74 = arith.constant 0 : index
    %c0_75 = arith.constant 0 : index
    %114 = vector.load %arg16[%c0_73, %c0_74, %c0_75] : memref<1x1x32xf32, #tpu.memory_space<vmem>>, vector<1x1x32xf32>
    %115 = vector.shape_cast %114 : vector<1x1x32xf32> to vector<1x32xf32>
    %116 = vector.shape_cast %113 : vector<1x32xf32> to vector<1x1x32xf32>
    tpu.vector_store %arg16[%c0_73, %c0_74, %c0_75], %116 {strides = array<i32>} : memref<1x1x32xf32, #tpu.memory_space<vmem>>, vector<1x1x32xf32>,
    return
  }
  func.func @transform_0(%arg0: i32) -> (i32, i32, i32) {
    %c0_i32 = arith.constant 0 : i32
    %c0_i32_0 = arith.constant 0 : i32
    %c0_i32_1 = arith.constant 0 : i32
    return %arg0, %c0_i32, %c0_i32_0 : i32, i32, i32
  }
  func.func @transform_1(%arg0: i32) -> (i32, i32, i32) {
    %c0_i32 = arith.constant 0 : i32
    %c0_i32_0 = arith.constant 0 : i32
    %c0_i32_1 = arith.constant 0 : i32
    %c0_i32_2 = arith.constant 0 : i32
    return %c0_i32, %c0_i32_0, %c0_i32_1 : i32, i32, i32
  }
  func.func @transform_2(%arg0: i32) -> (i32, i32) {
    %c0_i32 = arith.constant 0 : i32
    %c0_i32_0 = arith.constant 0 : i32
    %c0_i32_1 = arith.constant 0 : i32
    return %c0_i32, %c0_i32_0 : i32, i32
  }
  func.func @transform_3(%arg0: i32) -> (i32, i32) {
    %c0_i32 = arith.constant 0 : i32
    %c0_i32_0 = arith.constant 0 : i32
    %c0_i32_1 = arith.constant 0 : i32
    return %c0_i32, %c0_i32_0 : i32, i32
  }
  func.func @transform_4(%arg0: i32) -> (i32, i32) {
    %c0_i32 = arith.constant 0 : i32
    %c0_i32_0 = arith.constant 0 : i32
    %c0_i32_1 = arith.constant 0 : i32
    return %c0_i32, %c0_i32_0 : i32, i32
  }
  func.func @transform_5(%arg0: i32) -> (i32, i32, i32) {
    %c0_i32 = arith.constant 0 : i32
    %c0_i32_0 = arith.constant 0 : i32
    %c0_i32_1 = arith.constant 0 : i32
    %c0_i32_2 = arith.constant 0 : i32
    return %c0_i32, %c0_i32_0, %c0_i32_1 : i32, i32, i32
  }
  func.func @transform_6(%arg0: i32) -> (i32, i32) {
    %c0_i32 = arith.constant 0 : i32
    %c0_i32_0 = arith.constant 0 : i32
    %c0_i32_1 = arith.constant 0 : i32
    return %c0_i32, %c0_i32_0 : i32, i32
  }
  func.func @transform_7(%arg0: i32) -> (i32, i32) {
    %c0_i32 = arith.constant 0 : i32
    %c0_i32_0 = arith.constant 0 : i32
    %c0_i32_1 = arith.constant 0 : i32
    return %c0_i32, %c0_i32_0 : i32, i32
  }
  func.func @transform_8(%arg0: i32) -> (i32, i32) {
    %c0_i32 = arith.constant 0 : i32
    %c0_i32_0 = arith.constant 0 : i32
    %c0_i32_1 = arith.constant 0 : i32
    return %c0_i32, %c0_i32_0 : i32, i32
  }
  func.func @transform_9(%arg0: i32) -> (i32, i32, i32) {
    %c0_i32 = arith.constant 0 : i32
    %c0_i32_0 = arith.constant 0 : i32
    %c0_i32_1 = arith.constant 0 : i32
    %c0_i32_2 = arith.constant 0 : i32
    return %c0_i32, %c0_i32_0, %c0_i32_1 : i32, i32, i32
  }
  func.func @transform_10(%arg0: i32) -> (i32, i32) {
    %c0_i32 = arith.constant 0 : i32
    %c0_i32_0 = arith.constant 0 : i32
    %c0_i32_1 = arith.constant 0 : i32
    return %c0_i32, %c0_i32_0 : i32, i32
  }
  func.func @transform_11(%arg0: i32) -> (i32, i32) {
    %c0_i32 = arith.constant 0 : i32
    %c0_i32_0 = arith.constant 0 : i32
    %c0_i32_1 = arith.constant 0 : i32
    return %c0_i32, %c0_i32_0 : i32, i32
  }
  func.func @transform_12(%arg0: i32) -> (i32, i32) {
    %c0_i32 = arith.constant 0 : i32
    %c0_i32_0 = arith.constant 0 : i32
    %c0_i32_1 = arith.constant 0 : i32
    return %c0_i32, %c0_i32_0 : i32, i32
  }
  func.func @transform_13(%arg0: i32) -> (i32, i32) {
    %c0_i32 = arith.constant 0 : i32
    %c0_i32_0 = arith.constant 0 : i32
    %c0_i32_1 = arith.constant 0 : i32
    return %c0_i32, %c0_i32_0 : i32, i32
  }
  func.func @transform_14(%arg0: i32) -> (i32, i32) {
    %c0_i32 = arith.constant 0 : i32
    %c0_i32_0 = arith.constant 0 : i32
    %c0_i32_1 = arith.constant 0 : i32
    return %c0_i32, %c0_i32_0 : i32, i32
  }
  func.func @transform_15(%arg0: i32) -> (i32, i32, i32) {
    %c0_i32 = arith.constant 0 : i32
    %c0_i32_0 = arith.constant 0 : i32
    %c0_i32_1 = arith.constant 0 : i32
    return %arg0, %c0_i32, %c0_i32_0 : i32, i32, i32
  }
}

</mosaic_0001>

<llo_original>
// kernel: img_enc_forward.1
$region0: #{img_enc_forward.1}
  #allocation0 [shape = 'u32[]', space=smem, size = 0x4, offset = 0x4, fixed_abs, tag = 'smem constant byte address 0x4 - core index']
  #allocation1 [shape = 'u32[72,128]{1,0:T(1,128)}', space=vmem, size = 0x9000, scoped, tag = 'internal scratch']
  %s0 = inlined_call_operand.vmem [shape: bf16[2,46,138], index: 0, kind: input, shape index: {}]
  %s1 = inlined_call_operand.vmem [shape: bf16[3,138,176], index: 1, kind: input, shape index: {}]
  %s2 = inlined_call_operand.vmem [shape: f32[1,176], index: 2, kind: input, shape index: {}]
  %s3 = inlined_call_operand.vmem [shape: bf16[48,44], index: 3, kind: input, shape index: {}]
  %s4 = inlined_call_operand.vmem [shape: bf16[176,256], index: 4, kind: input, shape index: {}]
  %s5 = inlined_call_operand.vmem [shape: bf16[3,128,80], index: 5, kind: input, shape index: {}]
  %s6 = inlined_call_operand.vmem [shape: f32[1,80], index: 6, kind: input, shape index: {}]
  %s7 = inlined_call_operand.vmem [shape: bf16[32,20], index: 7, kind: input, shape index: {}]
  %s8 = inlined_call_operand.vmem [shape: bf16[80,256], index: 8, kind: input, shape index: {}]
  %s9 = inlined_call_operand.vmem [shape: bf16[3,128,32], index: 9, kind: input, shape index: {}]
  %s10 = inlined_call_operand.vmem [shape: f32[1,32], index: 10, kind: input, shape index: {}]
  %s11 = inlined_call_operand.vmem [shape: bf16[16,8], index: 11, kind: input, shape index: {}]
  %s12 = inlined_call_operand.vmem [shape: bf16[32,256], index: 12, kind: input, shape index: {}]
  %s13 = inlined_call_operand.vmem [shape: bf16[128,128], index: 13, kind: input, shape index: {}]
  %s14 = inlined_call_operand.vmem [shape: f32[1,32], index: 14, kind: input, shape index: {}]
  %s15 = inlined_call_operand.hbm [shape: f32[2,1,32], index: 15, kind: output, shape index: {}]
  %s16 = sld [smem:[#allocation0]]
  $region93: #{img_enc_forward.1} parent=0
    _
  %s18 = ssub.s32 1, %s16
  %s19 = scalar_select 0, %s18, %s16
  $region1: #{img_enc_forward.1} parent=0
    #allocation2 [shape = 'u8[1024]{0}', space=vmem, size = 0x400, scoped, tag = 'output window, operand 0']
    #allocation3 [shape = 's32[2]{0}', space=sflag, size = 0x8, scoped, tag = 'scoped memory for img_enc_forward.1']
    %20 = vsyncpa [#allocation3], 0
    %s21 = scalar_lea.sflag [#allocation3], 1
    %22 = vsyncpa %s21, 0
    loop: start=0, step=1, limit=4
    $region2: #{img_enc_forward.1} parent=1 // loop_pre_header
      _
    $region3: #{img_enc_forward.1} parent=1 // loop_header
      %s24 = sphi 0, %s28
      %p25 = scmp.ge.s32.totalorder %s24, 4
      %s34 = sphi 0, %s36
      %s37 = sphi 0, %s34
      %s38 = sphi 0, %s37
      %s54 = sphi 0, %s38
      %s58 = sphi 0, %s58
      %s60 = sphi 0, %s58
      %s61 = sphi 0, %s60
      %s75 = sphi 0, %s61
      %s79 = sphi 0, %s79
      %s81 = sphi 0, %s79
      %s82 = sphi 0, %s81
      %s96 = sphi 0, %s82
      %s100 = sphi 0, %s100
      %s102 = sphi 0, %s100
      %s103 = sphi 0, %s102
      %s117 = sphi 0, %s103
      %s121 = sphi 0, %s121
      %s123 = sphi 0, %s121
      %s124 = sphi 0, %s123
      %s138 = sphi 0, %s124
      %s142 = sphi 0, %s142
      %s144 = sphi 0, %s142
      %s145 = sphi 0, %s144
      %s159 = sphi 0, %s145
      %s163 = sphi 0, %s163
      %s165 = sphi 0, %s163
      %s166 = sphi 0, %s165
      %s180 = sphi 0, %s166
      %s184 = sphi 0, %s184
      %s186 = sphi 0, %s184
      %s187 = sphi 0, %s186
      %s201 = sphi 0, %s187
      %s205 = sphi 0, %s205
      %s207 = sphi 0, %s205
      %s208 = sphi 0, %s207
      %s222 = sphi 0, %s208
      %s226 = sphi 0, %s226
      %s228 = sphi 0, %s226
      %s229 = sphi 0, %s228
      %s243 = sphi 0, %s229
      %s247 = sphi 0, %s247
      %s249 = sphi 0, %s247
      %s250 = sphi 0, %s249
      %s264 = sphi 0, %s250
      %s268 = sphi 0, %s268
      %s270 = sphi 0, %s268
      %s271 = sphi 0, %s270
      %s285 = sphi 0, %s271
      %s289 = sphi 0, %s289
      %s291 = sphi 0, %s289
      %s292 = sphi 0, %s291
      %s306 = sphi 0, %s292
      %s310 = sphi 0, %s310
      %s312 = sphi 0, %s310
      %s313 = sphi 0, %s312
      %s327 = sphi 0, %s313
      %s331 = sphi 0, %s331
      %s333 = sphi 0, %s331
      %s334 = sphi 0, %s333
      %s348 = sphi 0, %s334
      %s354 = sphi 0, %s356
      %s357 = sphi 0, %s354
      %s358 = sphi 0, %s357
      %s374 = sphi 0, %s358
    $region4: #{img_enc_forward.1} parent=1 // loop_header_branch
      %27 = sbr.rel (%p25) target = $region8
    $region5: #{img_enc_forward.1} parent=1 // loop_body
      %s29 = ssub.s32 %s24, 1
      %s30 = ssub.s32 %s24, 2
      %s31 = sadd.s32 %s24, 1
      %s32 = ssub.s32 %s24, %s31
      %p33 = scmp.eq.s32.totalorder %s32, 0
      %s35 = sadd.s32 %s34, 1
      %s36 = scalar_select %p33, %s34, %s35
      %p39 = pneg %p33
      %p40 = scmp.eq.s32.totalorder %s24, 1
      %p41 = por %p39, %p40
      %p42 = scmp.ne.s32.totalorder %s34, %s37
      %p43 = scmp.eq.s32.totalorder %s24, 0
      %p44 = por %p42, %p43
      %p45 = scmp.ne.s32.totalorder %s34, %s37
      %p46 = scmp.eq.s32.totalorder %s29, 1
      %p47 = por %p45, %p46
      %p48 = scmp.ne.s32.totalorder %s37, %s38
      %p49 = scmp.eq.s32.totalorder %s29, 0
      %p50 = por %p48, %p49
      %p51 = scmp.ne.s32.totalorder %s37, %s38
      %p52 = scmp.eq.s32.totalorder %s30, 1
      %p53 = por %p51, %p52
      %p55 = scmp.ne.s32.totalorder %s38, %s54
      %p56 = scmp.eq.s32.totalorder %s30, 0
      %p57 = por %p55, %p56
      %s59 = sadd.s32 %s58, 1
      %p62 = scmp.eq.s32.totalorder %s24, 1
      %p63 = scmp.ne.s32.totalorder %s58, %s60
      %p64 = scmp.eq.s32.totalorder %s24, 0
      %p65 = por %p63, %p64
      %p66 = scmp.ne.s32.totalorder %s58, %s60
      %p67 = scmp.eq.s32.totalorder %s29, 1
      %p68 = por %p66, %p67
      %p69 = scmp.ne.s32.totalorder %s60, %s61
      %p70 = scmp.eq.s32.totalorder %s29, 0
      %p71 = por %p69, %p70
      %p72 = scmp.ne.s32.totalorder %s60, %s61
      %p73 = scmp.eq.s32.totalorder %s30, 1
      %p74 = por %p72, %p73
      %p76 = scmp.ne.s32.totalorder %s61, %s75
      %p77 = scmp.eq.s32.totalorder %s30, 0
      %p78 = por %p76, %p77
      %s80 = sadd.s32 %s79, 1
      %p83 = scmp.eq.s32.totalorder %s24, 1
      %p84 = scmp.ne.s32.totalorder %s79, %s81
      %p85 = scmp.eq.s32.totalorder %s24, 0
      %p86 = por %p84, %p85
      %p87 = scmp.ne.s32.totalorder %s79, %s81
      %p88 = scmp.eq.s32.totalorder %s29, 1
      %p89 = por %p87, %p88
      %p90 = scmp.ne.s32.totalorder %s81, %s82
      %p91 = scmp.eq.s32.totalorder %s29, 0
      %p92 = por %p90, %p91
      %p93 = scmp.ne.s32.totalorder %s81, %s82
      %p94 = scmp.eq.s32.totalorder %s30, 1
      %p95 = por %p93, %p94
      %p97 = scmp.ne.s32.totalorder %s82, %s96
      %p98 = scmp.eq.s32.totalorder %s30, 0
      %p99 = por %p97, %p98
      %s101 = sadd.s32 %s100, 1
      %p104 = scmp.eq.s32.totalorder %s24, 1
      %p105 = scmp.ne.s32.totalorder %s100, %s102
      %p106 = scmp.eq.s32.totalorder %s24, 0
      %p107 = por %p105, %p106
      %p108 = scmp.ne.s32.totalorder %s100, %s102
      %p109 = scmp.eq.s32.totalorder %s29, 1
      %p110 = por %p108, %p109
      %p111 = scmp.ne.s32.totalorder %s102, %s103
      %p112 = scmp.eq.s32.totalorder %s29, 0
      %p113 = por %p111, %p112
      %p114 = scmp.ne.s32.totalorder %s102, %s103
      %p115 = scmp.eq.s32.totalorder %s30, 1
      %p116 = por %p114, %p115
      %p118 = scmp.ne.s32.totalorder %s103, %s117
      %p119 = scmp.eq.s32.totalorder %s30, 0
      %p120 = por %p118, %p119
      %s122 = sadd.s32 %s121, 1
      %p125 = scmp.eq.s32.totalorder %s24, 1
      %p126 = scmp.ne.s32.totalorder %s121, %s123
      %p127 = scmp.eq.s32.totalorder %s24, 0
      %p128 = por %p126, %p127
      %p129 = scmp.ne.s32.totalorder %s121, %s123
      %p130 = scmp.eq.s32.totalorder %s29, 1
      %p131 = por %p129, %p130
      %p132 = scmp.ne.s32.totalorder %s123, %s124
      %p133 = scmp.eq.s32.totalorder %s29, 0
      %p134 = por %p132, %p133
      %p135 = scmp.ne.s32.totalorder %s123, %s124
      %p136 = scmp.eq.s32.totalorder %s30, 1
      %p137 = por %p135, %p136
      %p139 = scmp.ne.s32.totalorder %s124, %s138
      %p140 = scmp.eq.s32.totalorder %s30, 0
      %p141 = por %p139, %p140
      %s143 = sadd.s32 %s142, 1
      %p146 = scmp.eq.s32.totalorder %s24, 1
      %p147 = scmp.ne.s32.totalorder %s142, %s144
      %p148 = scmp.eq.s32.totalorder %s24, 0
      %p149 = por %p147, %p148
      %p150 = scmp.ne.s32.totalorder %s142, %s144
      %p151 = scmp.eq.s32.totalorder %s29, 1
      %p152 = por %p150, %p151
      %p153 = scmp.ne.s32.totalorder %s144, %s145
      %p154 = scmp.eq.s32.totalorder %s29, 0
      %p155 = por %p153, %p154
      %p156 = scmp.ne.s32.totalorder %s144, %s145
      %p157 = scmp.eq.s32.totalorder %s30, 1
      %p158 = por %p156, %p157
      %p160 = scmp.ne.s32.totalorder %s145, %s159
      %p161 = scmp.eq.s32.totalorder %s30, 0
      %p162 = por %p160, %p161
      %s164 = sadd.s32 %s163, 1
      %p167 = scmp.eq.s32.totalorder %s24, 1
      %p168 = scmp.ne.s32.totalorder %s163, %s165
      %p169 = scmp.eq.s32.totalorder %s24, 0
      %p170 = por %p168, %p169
      %p171 = scmp.ne.s32.totalorder %s163, %s165
      %p172 = scmp.eq.s32.totalorder %s29, 1
      %p173 = por %p171, %p172
      %p174 = scmp.ne.s32.totalorder %s165, %s166
      %p175 = scmp.eq.s32.totalorder %s29, 0
      %p176 = por %p174, %p175
      %p177 = scmp.ne.s32.totalorder %s165, %s166
      %p178 = scmp.eq.s32.totalorder %s30, 1
      %p179 = por %p177, %p178
      %p181 = scmp.ne.s32.totalorder %s166, %s180
      %p182 = scmp.eq.s32.totalorder %s30, 0
      %p183 = por %p181, %p182
      %s185 = sadd.s32 %s184, 1
      %p188 = scmp.eq.s32.totalorder %s24, 1
      %p189 = scmp.ne.s32.totalorder %s184, %s186
      %p190 = scmp.eq.s32.totalorder %s24, 0
      %p191 = por %p189, %p190
      %p192 = scmp.ne.s32.totalorder %s184, %s186
      %p193 = scmp.eq.s32.totalorder %s29, 1
      %p194 = por %p192, %p193
      %p195 = scmp.ne.s32.totalorder %s186, %s187
      %p196 = scmp.eq.s32.totalorder %s29, 0
      %p197 = por %p195, %p196
      %p198 = scmp.ne.s32.totalorder %s186, %s187
      %p199 = scmp.eq.s32.totalorder %s30, 1
      %p200 = por %p198, %p199
      %p202 = scmp.ne.s32.totalorder %s187, %s201
      %p203 = scmp.eq.s32.totalorder %s30, 0
      %p204 = por %p202, %p203
      %s206 = sadd.s32 %s205, 1
      %p209 = scmp.eq.s32.totalorder %s24, 1
      %p210 = scmp.ne.s32.totalorder %s205, %s207
      %p211 = scmp.eq.s32.totalorder %s24, 0
      %p212 = por %p210, %p211
      %p213 = scmp.ne.s32.totalorder %s205, %s207
      %p214 = scmp.eq.s32.totalorder %s29, 1
      %p215 = por %p213, %p214
      %p216 = scmp.ne.s32.totalorder %s207, %s208
      %p217 = scmp.eq.s32.totalorder %s29, 0
      %p218 = por %p216, %p217
      %p219 = scmp.ne.s32.totalorder %s207, %s208
      %p220 = scmp.eq.s32.totalorder %s30, 1
      %p221 = por %p219, %p220
      %p223 = scmp.ne.s32.totalorder %s208, %s222
      %p224 = scmp.eq.s32.totalorder %s30, 0
      %p225 = por %p223, %p224
      %s227 = sadd.s32 %s226, 1
      %p230 = scmp.eq.s32.totalorder %s24, 1
      %p231 = scmp.ne.s32.totalorder %s226, %s228
      %p232 = scmp.eq.s32.totalorder %s24, 0
      %p233 = por %p231, %p232
      %p234 = scmp.ne.s32.totalorder %s226, %s228
      %p235 = scmp.eq.s32.totalorder %s29, 1
      %p236 = por %p234, %p235
      %p237 = scmp.ne.s32.totalorder %s228, %s229
      %p238 = scmp.eq.s32.totalorder %s29, 0
      %p239 = por %p237, %p238
      %p240 = scmp.ne.s32.totalorder %s228, %s229
      %p241 = scmp.eq.s32.totalorder %s30, 1
      %p242 = por %p240, %p241
      %p244 = scmp.ne.s32.totalorder %s229, %s243
      %p245 = scmp.eq.s32.totalorder %s30, 0
      %p246 = por %p244, %p245
      %s248 = sadd.s32 %s247, 1
      %p251 = scmp.eq.s32.totalorder %s24, 1
      %p252 = scmp.ne.s32.totalorder %s247, %s249
      %p253 = scmp.eq.s32.totalorder %s24, 0
      %p254 = por %p252, %p253
      %p255 = scmp.ne.s32.totalorder %s247, %s249
      %p256 = scmp.eq.s32.totalorder %s29, 1
      %p257 = por %p255, %p256
      %p258 = scmp.ne.s32.totalorder %s249, %s250
      %p259 = scmp.eq.s32.totalorder %s29, 0
      %p260 = por %p258, %p259
      %p261 = scmp.ne.s32.totalorder %s249, %s250
      %p262 = scmp.eq.s32.totalorder %s30, 1
      %p263 = por %p261, %p262
      %p265 = scmp.ne.s32.totalorder %s250, %s264
      %p266 = scmp.eq.s32.totalorder %s30, 0
      %p267 = por %p265, %p266
      %s269 = sadd.s32 %s268, 1
      %p272 = scmp.eq.s32.totalorder %s24, 1
      %p273 = scmp.ne.s32.totalorder %s268, %s270
      %p274 = scmp.eq.s32.totalorder %s24, 0
      %p275 = por %p273, %p274
      %p276 = scmp.ne.s32.totalorder %s268, %s270
      %p277 = scmp.eq.s32.totalorder %s29, 1
      %p278 = por %p276, %p277
      %p279 = scmp.ne.s32.totalorder %s270, %s271
      %p280 = scmp.eq.s32.totalorder %s29, 0
      %p281 = por %p279, %p280
      %p282 = scmp.ne.s32.totalorder %s270, %s271
      %p283 = scmp.eq.s32.totalorder %s30, 1
      %p284 = por %p282, %p283
      %p286 = scmp.ne.s32.totalorder %s271, %s285
      %p287 = scmp.eq.s32.totalorder %s30, 0
      %p288 = por %p286, %p287
      %s290 = sadd.s32 %s289, 1
      %p293 = scmp.eq.s32.totalorder %s24, 1
      %p294 = scmp.ne.s32.totalorder %s289, %s291
      %p295 = scmp.eq.s32.totalorder %s24, 0
      %p296 = por %p294, %p295
      %p297 = scmp.ne.s32.totalorder %s289, %s291
      %p298 = scmp.eq.s32.totalorder %s29, 1
      %p299 = por %p297, %p298
      %p300 = scmp.ne.s32.totalorder %s291, %s292
      %p301 = scmp.eq.s32.totalorder %s29, 0
      %p302 = por %p300, %p301
      %p303 = scmp.ne.s32.totalorder %s291, %s292
      %p304 = scmp.eq.s32.totalorder %s30, 1
      %p305 = por %p303, %p304
      %p307 = scmp.ne.s32.totalorder %s292, %s306
      %p308 = scmp.eq.s32.totalorder %s30, 0
      %p309 = por %p307, %p308
      %s311 = sadd.s32 %s310, 1
      %p314 = scmp.eq.s32.totalorder %s24, 1
      %p315 = scmp.ne.s32.totalorder %s310, %s312
      %p316 = scmp.eq.s32.totalorder %s24, 0
      %p317 = por %p315, %p316
      %p318 = scmp.ne.s32.totalorder %s310, %s312
      %p319 = scmp.eq.s32.totalorder %s29, 1
      %p320 = por %p318, %p319
      %p321 = scmp.ne.s32.totalorder %s312, %s313
      %p322 = scmp.eq.s32.totalorder %s29, 0
      %p323 = por %p321, %p322
      %p324 = scmp.ne.s32.totalorder %s312, %s313
      %p325 = scmp.eq.s32.totalorder %s30, 1
      %p326 = por %p324, %p325
      %p328 = scmp.ne.s32.totalorder %s313, %s327
      %p329 = scmp.eq.s32.totalorder %s30, 0
      %p330 = por %p328, %p329
      %s332 = sadd.s32 %s331, 1
      %p335 = scmp.eq.s32.totalorder %s24, 1
      %p336 = scmp.ne.s32.totalorder %s331, %s333
      %p337 = scmp.eq.s32.totalorder %s24, 0
      %p338 = por %p336, %p337
      %p339 = scmp.ne.s32.totalorder %s331, %s333
      %p340 = scmp.eq.s32.totalorder %s29, 1
      %p341 = por %p339, %p340
      %p342 = scmp.ne.s32.totalorder %s333, %s334
      %p343 = scmp.eq.s32.totalorder %s29, 0
      %p344 = por %p342, %p343
      %p345 = scmp.ne.s32.totalorder %s333, %s334
      %p346 = scmp.eq.s32.totalorder %s30, 1
      %p347 = por %p345, %p346
      %p349 = scmp.ne.s32.totalorder %s334, %s348
      %p350 = scmp.eq.s32.totalorder %s30, 0
      %p351 = por %p349, %p350
      %s352 = ssub.s32 %s24, %s31
      %p353 = scmp.eq.s32.totalorder %s352, 0
      %s355 = sadd.s32 %s354, 1
      %s356 = scalar_select %p353, %s354, %s355
      %p359 = pneg %p353
      %p360 = scmp.eq.s32.totalorder %s24, 1
      %p361 = por %p359, %p360
      %p362 = scmp.ne.s32.totalorder %s354, %s357
      %p363 = scmp.eq.s32.totalorder %s24, 0
      %p364 = por %p362, %p363
      %p365 = scmp.ne.s32.totalorder %s354, %s357
      %p366 = scmp.eq.s32.totalorder %s29, 1
      %p367 = por %p365, %p366
      %p368 = scmp.ne.s32.totalorder %s357, %s358
      %p369 = scmp.eq.s32.totalorder %s29, 0
      %p370 = por %p368, %p369
      %p371 = scmp.ne.s32.totalorder %s357, %s358
      %p372 = scmp.eq.s32.totalorder %s30, 1
      %p373 = por %p371, %p372
      %p375 = scmp.ne.s32.totalorder %s358, %s374
      %p376 = scmp.eq.s32.totalorder %s30, 0
      %p377 = por %p375, %p376
      %p378 = scmp.le.s32.totalorder 1, %s24
      %p379 = scmp.lt.s32.totalorder %s24, 3
      %p380 = pnand %p378, %p379
      %p381 = pneg %p380
      // Predicated region
      $region9: #{img_enc_forward.1} parent=5 // pred_check
        _
      $region10: #{img_enc_forward.1} parent=5 // pred_check_branch
        %383 = sbr.rel (%p380) target = $region12
      $region11: #{img_enc_forward.1} parent=5 // pred_region
        %s384 = ssub.s32 %s24, 1
        // Predicated region
        $region13: #{img_enc_forward.1} parent=11 // pred_check
          %p385 = pneg %p71
        $region14: #{img_enc_forward.1} parent=11 // pred_check_branch
          %387 = sbr.rel (%p385) target = $region16
        $region15: #{img_enc_forward.1} parent=11 // pred_region
          _
        $region16: #{img_enc_forward.1} parent=11 // pred_fallthru
          _
        // Predicated region
        $region17: #{img_enc_forward.1} parent=11 // pred_check
          %p388 = pneg %p92
        $region18: #{img_enc_forward.1} parent=11 // pred_check_branch
          %390 = sbr.rel (%p388) target = $region20
        $region19: #{img_enc_forward.1} parent=11 // pred_region
          _
        $region20: #{img_enc_forward.1} parent=11 // pred_fallthru
          _
        // Predicated region
        $region21: #{img_enc_forward.1} parent=11 // pred_check
          %p391 = pneg %p113
        $region22: #{img_enc_forward.1} parent=11 // pred_check_branch
          %393 = sbr.rel (%p391) target = $region24
        $region23: #{img_enc_forward.1} parent=11 // pred_region
          _
        $region24: #{img_enc_forward.1} parent=11 // pred_fallthru
          _
        // Predicated region
        $region25: #{img_enc_forward.1} parent=11 // pred_check
          %p394 = pneg %p134
        $region26: #{img_enc_forward.1} parent=11 // pred_check_branch
          %396 = sbr.rel (%p394) target = $region28
        $region27: #{img_enc_forward.1} parent=11 // pred_region
          _
        $region28: #{img_enc_forward.1} parent=11 // pred_fallthru
          _
        // Predicated region
        $region29: #{img_enc_forward.1} parent=11 // pred_check
          %p397 = pneg %p155
        $region30: #{img_enc_forward.1} parent=11 // pred_check_branch
          %399 = sbr.rel (%p397) target = $region32
        $region31: #{img_enc_forward.1} parent=11 // pred_region
          _
        $region32: #{img_enc_forward.1} parent=11 // pred_fallthru
          _
        // Predicated region
        $region33: #{img_enc_forward.1} parent=11 // pred_check
          %p400 = pneg %p176
        $region34: #{img_enc_forward.1} parent=11 // pred_check_branch
          %402 = sbr.rel (%p400) target = $region36
        $region35: #{img_enc_forward.1} parent=11 // pred_region
          _
        $region36: #{img_enc_forward.1} parent=11 // pred_fallthru
          _
        // Predicated region
        $region37: #{img_enc_forward.1} parent=11 // pred_check
          %p403 = pneg %p197
        $region38: #{img_enc_forward.1} parent=11 // pred_check_branch
          %405 = sbr.rel (%p403) target = $region40
        $region39: #{img_enc_forward.1} parent=11 // pred_region
          _
        $region40: #{img_enc_forward.1} parent=11 // pred_fallthru
          _
        // Predicated region
        $region41: #{img_enc_forward.1} parent=11 // pred_check
          %p406 = pneg %p218
        $region42: #{img_enc_forward.1} parent=11 // pred_check_branch
          %408 = sbr.rel (%p406) target = $region44
        $region43: #{img_enc_forward.1} parent=11 // pred_region
          _
        $region44: #{img_enc_forward.1} parent=11 // pred_fallthru
          _
        // Predicated region
        $region45: #{img_enc_forward.1} parent=11 // pred_check
          %p409 = pneg %p239
        $region46: #{img_enc_forward.1} parent=11 // pred_check_branch
          %411 = sbr.rel (%p409) target = $region48
        $region47: #{img_enc_forward.1} parent=11 // pred_region
          _
        $region48: #{img_enc_forward.1} parent=11 // pred_fallthru
          _
        // Predicated region
        $region49: #{img_enc_forward.1} parent=11 // pred_check
          %p412 = pneg %p260
        $region50: #{img_enc_forward.1} parent=11 // pred_check_branch
          %414 = sbr.rel (%p412) target = $region52
        $region51: #{img_enc_forward.1} parent=11 // pred_region
          _
        $region52: #{img_enc_forward.1} parent=11 // pred_fallthru
          _
        // Predicated region
        $region53: #{img_enc_forward.1} parent=11 // pred_check
          %p415 = pneg %p281
        $region54: #{img_enc_forward.1} parent=11 // pred_check_branch
          %417 = sbr.rel (%p415) target = $region56
        $region55: #{img_enc_forward.1} parent=11 // pred_region
          _
        $region56: #{img_enc_forward.1} parent=11 // pred_fallthru
          _
        // Predicated region
        $region57: #{img_enc_forward.1} parent=11 // pred_check
          %p418 = pneg %p302
        $region58: #{img_enc_forward.1} parent=11 // pred_check_branch
          %420 = sbr.rel (%p418) target = $region60
        $region59: #{img_enc_forward.1} parent=11 // pred_region
          _
        $region60: #{img_enc_forward.1} parent=11 // pred_fallthru
          _
        // Predicated region
        $region61: #{img_enc_forward.1} parent=11 // pred_check
          %p421 = pneg %p323
        $region62: #{img_enc_forward.1} parent=11 // pred_check_branch
          %423 = sbr.rel (%p421) target = $region64
        $region63: #{img_enc_forward.1} parent=11 // pred_region
          _
        $region64: #{img_enc_forward.1} parent=11 // pred_fallthru
          _
        // Predicated region
        $region65: #{img_enc_forward.1} parent=11 // pred_check
          %p424 = pneg %p344
        $region66: #{img_enc_forward.1} parent=11 // pred_check_branch
          %426 = sbr.rel (%p424) target = $region68
        $region67: #{img_enc_forward.1} parent=11 // pred_region
          _
        $region68: #{img_enc_forward.1} parent=11 // pred_fallthru
          _
      $region12: #{img_enc_forward.1} parent=5 // pred_fallthru
        _
      %p427 = scmp.lt.s32.totalorder %s24, 2
      // Predicated region
      $region69: #{img_enc_forward.1} parent=5 // pred_check
        %p428 = pneg %p427
      $region70: #{img_enc_forward.1} parent=5 // pred_check_branch
        %430 = sbr.rel (%p428) target = $region72
      $region71: #{img_enc_forward.1} parent=5 // pred_region
        // Predicated region
        $region73: #{img_enc_forward.1} parent=71 // pred_check
          %p431 = pneg %p44
        $region74: #{img_enc_forward.1} parent=71 // pred_check_branch
          %433 = sbr.rel (%p431) target = $region76
        $region75: #{img_enc_forward.1} parent=71 // pred_region
          %p434 = scmp.lt.s32.totalorder %s24, 1
          %s435 = scalar_select %p434, %s24, 1
          %s436 = smul.addr %s435, 12
          %s437 = smul.addr %s436, 4
          %s438 = scalar_lea.vmem %s0, %s437
        $region76: #{img_enc_forward.1} parent=71 // pred_fallthru
          _
      $region72: #{img_enc_forward.1} parent=5 // pred_fallthru
        _
      %p439 = scmp.le.s32.totalorder 1, %s24
      %p440 = scmp.lt.s32.totalorder %s24, 3
      %p441 = pnand %p439, %p440
      %p442 = pneg %p441
      // Predicated region
      $region77: #{img_enc_forward.1} parent=5 // pred_check
        _
      $region78: #{img_enc_forward.1} parent=5 // pred_check_branch
        %444 = sbr.rel (%p441) target = $region80
      $region79: #{img_enc_forward.1} parent=5 // pred_region
        %s445 = ssub.s32 %s24, 1
        %p446 = scmp.lt.s32.totalorder %s29, 1
        %s447 = scalar_select %p446, %s29, 1
        %s448 = smul.addr %s447, 12
        %s449 = smul.addr %s448, 4
        %s450 = scalar_lea.vmem %s0, %s449
        %p451 = pneg %p50
        %p452 = pneg %p47
        %p453 = pneg %p71
        %p454 = pneg %p68
        %p455 = pneg %p92
        %p456 = pneg %p89
        %p457 = pneg %p113
        %p458 = pneg %p110
        %p459 = pneg %p134
        %p460 = pneg %p131
        %p461 = pneg %p155
        %p462 = pneg %p152
        %p463 = pneg %p176
        %p464 = pneg %p173
        %p465 = pneg %p197
        %p466 = pneg %p194
        %p467 = pneg %p218
        %p468 = pneg %p215
        %p469 = pneg %p239
        %p470 = pneg %p236
        %p471 = pneg %p260
        %p472 = pneg %p257
        %p473 = pneg %p281
        %p474 = pneg %p278
        %p475 = pneg %p302
        %p476 = pneg %p299
        %p477 = pneg %p323
        %p478 = pneg %p320
        %p479 = pneg %p344
        %p480 = pneg %p341
        %p481 = pneg %p370
        %p482 = pneg %p367
        %s483 = sand.u32 %s357, 1
        %s484 = scalar_lea.sflag [#allocation3], %s483
        %s485 = sand.u32 %s357, 1
        %s486 = scalar_lea.vmem [#allocation2], %s485
        %p487 = scmp.lt.s32.totalorder %s29, 1
        %s488 = scalar_select %p487, %s29, 1
        %s489 = smul.addr %s488, 12
        %s490 = smul.addr %s489, 4
        %s491 = scalar_lea.vmem %s0, %s490
        %v493 = vld [vmem:[%s491] sm:$0xff]
        %v494 = vld [vmem:[%s491 + $0x8] sm:$0xff]
        %v495 = vld [vmem:[%s491 + $0x10] sm:$0xff]
        %v496 = vld [vmem:[%s491 + $0x18] sm:$0xff]
        %v497 = vld [vmem:[%s491 + $0x20] sm:$0xff]
        %v498 = vld [vmem:[%s491 + $0x28] sm:$0x33]
        %v499 = vld [vmem:[%s491 + $0x28] sm:$0x77]
        %v500 = vld [vmem:[%s491] sm:$0xee]
        %v501 = vld [vmem:[%s1] sm:$0xff]
        %v502 = vld [vmem:[%s1 + $0x8] sm:$0xff]
        %v503 = vld [vmem:[%s1 + $0x10] sm:$0xff]
        %v504 = vld [vmem:[%s1 + $0x18] sm:$0xff]
        %v505 = vld [vmem:[%s1 + $0x20] sm:$0xff]
        %v506 = vld [vmem:[%s1 + $0x28] sm:$0xff]
        %v507 = vld [vmem:[%s1 + $0x30] sm:$0xff]
        %v508 = vld [vmem:[%s1 + $0x38] sm:$0xff]
        %v509 = vld [vmem:[%s1 + $0x40] sm:$0xff]
        %v510 = vld [vmem:[%s1 + $0x48] sm:$0xff]
        %v511 = vld [vmem:[%s1 + $0x50] sm:$0xff]
        %v512 = vld [vmem:[%s1 + $0x58] sm:$0xff]
        %v513 = vld [vmem:[%s1 + $0x60] sm:$0xff]
        %v514 = vld [vmem:[%s1 + $0x68] sm:$0xff]
        %v515 = vld [vmem:[%s1 + $0x70] sm:$0xff]
        %v516 = vld [vmem:[%s1 + $0x78] sm:$0xff]
        %v517 = vld [vmem:[%s1 + $0x80] sm:$0xff]
        %v518 = vld [vmem:[%s1 + $0x88] sm:$0x11]
        %s519 = scalar_lea.vmem %s1, 144
        %v520 = vld [vmem:[%s519] sm:$0xff]
        %v521 = vld [vmem:[%s519 + $0x8] sm:$0xff]
        %v522 = vld [vmem:[%s519 + $0x10] sm:$0xff]
        %v523 = vld [vmem:[%s519 + $0x18] sm:$0xff]
        %v524 = vld [vmem:[%s519 + $0x20] sm:$0xff]
        %v525 = vld [vmem:[%s519 + $0x28] sm:$0xff]
        %v526 = vld [vmem:[%s519 + $0x30] sm:$0xff]
        %v527 = vld [vmem:[%s519 + $0x38] sm:$0xff]
        %v528 = vld [vmem:[%s519 + $0x40] sm:$0xff]
        %v529 = vld [vmem:[%s519 + $0x48] sm:$0xff]
        %v530 = vld [vmem:[%s519 + $0x50] sm:$0xff]
        %v531 = vld [vmem:[%s519 + $0x58] sm:$0xff]
        %v532 = vld [vmem:[%s519 + $0x60] sm:$0xff]
        %v533 = vld [vmem:[%s519 + $0x68] sm:$0xff]
        %v534 = vld [vmem:[%s519 + $0x70] sm:$0xff]
        %v535 = vld [vmem:[%s519 + $0x78] sm:$0xff]
        %v536 = vld [vmem:[%s519 + $0x80] sm:$0xff]
        %v537 = vld [vmem:[%s519 + $0x88] sm:$0x11]
        %v544 = vunpack.c.l.b16 %v493
        %v545 = vunpack.c.h.b16 %v493
        %v546 = vunpack.c.l.b16 %v494
        %v547 = vunpack.c.h.b16 %v494
        %v548 = vunpack.c.l.b16 %v495
        %v549 = vunpack.c.h.b16 %v495
        %v550 = vunpack.c.l.b16 %v496
        %v551 = vunpack.c.h.b16 %v496
        %v552 = vunpack.c.l.b16 %v497
        %v553 = vunpack.c.h.b16 %v497
        %v554 = vunpack.c.l.b16 %v499
        %v555 = vunpack.c.h.b16 %v499
        %v556 = vpack.c.b16 %v546, %v544
        %v557 = vpack.c.b16 %v547, %v545
        %v558 = vpack.c.b16 %v550, %v548
        %v559 = vpack.c.b16 %v551, %v549
        %v560 = vpack.c.b16 %v554, %v552
        %v561 = vpack.c.b16 %v555, %v553
        %vm562 = vsmask.f32 7424
        %v564 = vshrl.u32 %v556, 16
        %v566 = vshll.u32 %v556, 16
        %v568 = vrot.slane %v566, 1
        %v569 = vor.u32 %v564, %v568
        %v571 = vshll.u32 %v558, 16
        %v573 = vrot.slane %v571, 1
        %v574 = vsel %vm562, %v569, %v573
        %v576 = vshrl.u32 %v557, 16
        %v578 = vshll.u32 %v557, 16
        %v580 = vrot.slane %v578, 1
        %v581 = vor.u32 %v576, %v580
        %v583 = vshll.u32 %v559, 16
        %v585 = vrot.slane %v583, 1
        %v586 = vsel %vm562, %v581, %v585
        %v587 = vshrl.u32 %v558, 16
        %v589 = vor.u32 %v587, %v573
        %v591 = vshll.u32 %v560, 16
        %v593 = vrot.slane %v591, 1
        %v594 = vsel %vm562, %v589, %v593
        %v595 = vshrl.u32 %v559, 16
        %v597 = vor.u32 %v595, %v585
        %v599 = vshll.u32 %v561, 16
        %v601 = vrot.slane %v599, 1
        %v602 = vsel %vm562, %v597, %v601
        %v603 = vshrl.u32 %v560, 16
        %v605 = vor.u32 %v603, %v593
        %v606 = vshrl.u32 %v561, 16
        %v608 = vor.u32 %v606, %v601
        %v630 = vunpack.c.l.b16 %v520
        %v631 = vunpack.c.h.b16 %v520
        %v632 = vunpack.c.l.b16 %v521
        %v633 = vunpack.c.h.b16 %v521
        %v634 = vunpack.c.l.b16 %v522
        %v635 = vunpack.c.h.b16 %v522
        %v636 = vunpack.c.l.b16 %v523
        %v637 = vunpack.c.h.b16 %v523
        %v638 = vunpack.c.l.b16 %v524
        %v639 = vunpack.c.h.b16 %v524
        %v640 = vunpack.c.l.b16 %v525
        %v641 = vunpack.c.h.b16 %v525
        %v642 = vunpack.c.l.b16 %v526
        %v643 = vunpack.c.h.b16 %v526
        %v644 = vunpack.c.l.b16 %v527
        %v645 = vunpack.c.h.b16 %v527
        %v646 = vunpack.c.l.b16 %v528
        %v647 = vunpack.c.h.b16 %v528
        %v648 = vunpack.c.l.b16 %v529
        %v649 = vunpack.c.h.b16 %v529
        %v650 = vunpack.c.l.b16 %v530
        %v651 = vunpack.c.h.b16 %v530
        %v652 = vunpack.c.l.b16 %v531
        %v653 = vunpack.c.h.b16 %v531
        %v654 = vunpack.c.l.b16 %v532
        %v655 = vunpack.c.h.b16 %v532
        %v656 = vunpack.c.l.b16 %v533
        %v657 = vunpack.c.h.b16 %v533
        %v658 = vunpack.c.l.b16 %v534
        %v659 = vunpack.c.h.b16 %v534
        %v660 = vunpack.c.l.b16 %v535
        %v661 = vunpack.c.h.b16 %v535
        %v662 = vunpack.c.l.b16 %v536
        %v663 = vunpack.c.h.b16 %v536
        %v664 = vunpack.c.l.b16 %v537
        %v665 = vunpack.c.h.b16 %v537
        %v666 = vpack.c.b16 %v632, %v630
        %v667 = vpack.c.b16 %v633, %v631
        %v668 = vpack.c.b16 %v636, %v634
        %v669 = vpack.c.b16 %v637, %v635
        %v670 = vpack.c.b16 %v640, %v638
        %v671 = vpack.c.b16 %v641, %v639
        %v672 = vpack.c.b16 %v644, %v642
        %v673 = vpack.c.b16 %v645, %v643
        %v674 = vpack.c.b16 %v648, %v646
        %v675 = vpack.c.b16 %v649, %v647
        %v676 = vpack.c.b16 %v652, %v650
        %v677 = vpack.c.b16 %v653, %v651
        %v678 = vpack.c.b16 %v656, %v654
        %v679 = vpack.c.b16 %v657, %v655
        %v680 = vpack.c.b16 %v660, %v658
        %v681 = vpack.c.b16 %v661, %v659
        %v682 = vpack.c.b16 %v664, %v662
        %v683 = vpack.c.b16 %v665, %v663
        %vm700 = vcmask 80896
        %v702 = vsel %vm700, %v586, 0
        %v705 = vsel %vm700, %v602, 0
        %v708 = vsel %vm700, %v608, 0
        %vm710 = vcmask 1044480
        %v712 = vsel %vm710, %v682, 0
        %v715 = vsel %vm710, %v683, 0
        %717 = vmatpush.bf16.msra.mxu0 %v680
        %718 = vmatpush.bf16.msra.mxu0 %v678
        %719 = vmatpush.bf16.msra.mxu0 %v676
        %720 = vmatpush.bf16.msra.mxu0 %v674
        %721 = vmatpush.bf16.msra.mxu0 %v672
        %722 = vmatpush.bf16.msra.mxu0 %v670
        %723 = vmatpush.bf16.msra.mxu0 %v668
        %724 = vmatpush.bf16.msra.mxu0 %v666
        %725 = vmatmul.bf16.gmra.mxu0 %v574
        %v726 = vpop.f32.mrf.mxu0
        %v727 = vadd.f32 0.0, %v726
        %v728 = vpop.f32.mrf.mxu0
        %v729 = vadd.f32 0.0, %v728
        %730 = vmatmul.bf16.gmra.mxu0 %v594
        %v731 = vpop.f32.mrf.mxu0
        %v732 = vadd.f32 0.0, %v731
        %v733 = vpop.f32.mrf.mxu0
        %v734 = vadd.f32 0.0, %v733
        %735 = vmatmul.bf16.gmra.mxu0 %v605
        %v736 = vpop.f32.mrf.mxu0
        %v737 = vadd.f32 0.0, %v736
        %v738 = vpop.f32.mrf.mxu0
        %v739 = vadd.f32 0.0, %v738
        %740 = vdwg.mxu0
        %741 = vmatpush.bf16.msra.mxu0 0
        %742 = vmatpush.bf16.msra.mxu0 0
        %743 = vmatpush.bf16.msra.mxu0 0
        %744 = vmatpush.bf16.msra.mxu0 0
        %745 = vmatpush.bf16.msra.mxu0 0
        %746 = vmatpush.bf16.msra.mxu0 0
        %747 = vmatpush.bf16.msra.mxu0 0
        %748 = vmatpush.bf16.msra.mxu0 %v712
        %749 = vmatmul.bf16.gmra.mxu0 %v702
        %v750 = vpop.f32.mrf.mxu0
        %v751 = vadd.f32 %v727, %v750
        %v752 = vpop.f32.mrf.mxu0
        %v753 = vadd.f32 %v729, %v752
        %754 = vmatmul.bf16.gmra.mxu0 %v705
        %v755 = vpop.f32.mrf.mxu0
        %v756 = vadd.f32 %v732, %v755
        %v757 = vpop.f32.mrf.mxu0
        %v758 = vadd.f32 %v734, %v757
        %759 = vmatmul.bf16.gmra.mxu0 %v708
        %v760 = vpop.f32.mrf.mxu0
        %v761 = vadd.f32 %v737, %v760
        %v762 = vpop.f32.mrf.mxu0
        %v763 = vadd.f32 %v739, %v762
        %764 = vdwg.mxu0
        %765 = vmatpush.bf16.msra.mxu0 %v681
        %766 = vmatpush.bf16.msra.mxu0 %v679
        %767 = vmatpush.bf16.msra.mxu0 %v677
        %768 = vmatpush.bf16.msra.mxu0 %v675
        %769 = vmatpush.bf16.msra.mxu0 %v673
        %770 = vmatpush.bf16.msra.mxu0 %v671
        %771 = vmatpush.bf16.msra.mxu0 %v669
        %772 = vmatpush.bf16.msra.mxu0 %v667
        %773 = vmatmul.bf16.gmra.mxu0 %v574
        %v774 = vpop.f32.mrf.mxu0
        %v775 = vadd.f32 0.0, %v774
        %v776 = vpop.f32.mrf.mxu0
        %v777 = vadd.f32 0.0, %v776
        %778 = vmatmul.bf16.gmra.mxu0 %v594
        %v779 = vpop.f32.mrf.mxu0
        %v780 = vadd.f32 0.0, %v779
        %v781 = vpop.f32.mrf.mxu0
        %v782 = vadd.f32 0.0, %v781
        %783 = vmatmul.bf16.gmra.mxu0 %v605
        %v784 = vpop.f32.mrf.mxu0
        %v785 = vadd.f32 0.0, %v784
        %v786 = vpop.f32.mrf.mxu0
        %v787 = vadd.f32 0.0, %v786
        %788 = vdwg.mxu0
        %789 = vmatpush.bf16.msra.mxu0 0
        %790 = vmatpush.bf16.msra.mxu0 0
        %791 = vmatpush.bf16.msra.mxu0 0
        %792 = vmatpush.bf16.msra.mxu0 0
        %793 = vmatpush.bf16.msra.mxu0 0
        %794 = vmatpush.bf16.msra.mxu0 0
        %795 = vmatpush.bf16.msra.mxu0 0
        %796 = vmatpush.bf16.msra.mxu0 %v715
        %797 = vmatmul.bf16.gmra.mxu0 %v702
        %v798 = vpop.f32.mrf.mxu0
        %v799 = vadd.f32 %v775, %v798
        %v800 = vpop.f32.mrf.mxu0
        %v801 = vadd.f32 %v777, %v800
        %802 = vmatmul.bf16.gmra.mxu0 %v705
        %v803 = vpop.f32.mrf.mxu0
        %v804 = vadd.f32 %v780, %v803
        %v805 = vpop.f32.mrf.mxu0
        %v806 = vadd.f32 %v782, %v805
        %807 = vmatmul.bf16.gmra.mxu0 %v708
        %v808 = vpop.f32.mrf.mxu0
        %v809 = vadd.f32 %v785, %v808
        %v810 = vpop.f32.mrf.mxu0
        %v811 = vadd.f32 %v787, %v810
        %812 = vdwg.mxu0
        %v814 = vunpack.c.l.b16 %v498
        %v815 = vunpack.c.h.b16 %v498
        %v816 = vpack.c.b16 %v814, %v552
        %v817 = vpack.c.b16 %v815, %v553
        %v839 = vunpack.c.l.b16 %v501
        %v840 = vunpack.c.h.b16 %v501
        %v841 = vunpack.c.l.b16 %v502
        %v842 = vunpack.c.h.b16 %v502
        %v843 = vunpack.c.l.b16 %v503
        %v844 = vunpack.c.h.b16 %v503
        %v845 = vunpack.c.l.b16 %v504
        %v846 = vunpack.c.h.b16 %v504
        %v847 = vunpack.c.l.b16 %v505
        %v848 = vunpack.c.h.b16 %v505
        %v849 = vunpack.c.l.b16 %v506
        %v850 = vunpack.c.h.b16 %v506
        %v851 = vunpack.c.l.b16 %v507
        %v852 = vunpack.c.h.b16 %v507
        %v853 = vunpack.c.l.b16 %v508
        %v854 = vunpack.c.h.b16 %v508
        %v855 = vunpack.c.l.b16 %v509
        %v856 = vunpack.c.h.b16 %v509
        %v857 = vunpack.c.l.b16 %v510
        %v858 = vunpack.c.h.b16 %v510
        %v859 = vunpack.c.l.b16 %v511
        %v860 = vunpack.c.h.b16 %v511
        %v861 = vunpack.c.l.b16 %v512
        %v862 = vunpack.c.h.b16 %v512
        %v863 = vunpack.c.l.b16 %v513
        %v864 = vunpack.c.h.b16 %v513
        %v865 = vunpack.c.l.b16 %v514
        %v866 = vunpack.c.h.b16 %v514
        %v867 = vunpack.c.l.b16 %v515
        %v868 = vunpack.c.h.b16 %v515
        %v869 = vunpack.c.l.b16 %v516
        %v870 = vunpack.c.h.b16 %v516
        %v871 = vunpack.c.l.b16 %v517
        %v872 = vunpack.c.h.b16 %v517
        %v873 = vunpack.c.l.b16 %v518
        %v874 = vunpack.c.h.b16 %v518
        %v875 = vpack.c.b16 %v841, %v839
        %v876 = vpack.c.b16 %v842, %v840
        %v877 = vpack.c.b16 %v845, %v843
        %v878 = vpack.c.b16 %v846, %v844
        %v879 = vpack.c.b16 %v849, %v847
        %v880 = vpack.c.b16 %v850, %v848
        %v881 = vpack.c.b16 %v853, %v851
        %v882 = vpack.c.b16 %v854, %v852
        %v883 = vpack.c.b16 %v857, %v855
        %v884 = vpack.c.b16 %v858, %v856
        %v885 = vpack.c.b16 %v861, %v859
        %v886 = vpack.c.b16 %v862, %v860
        %v887 = vpack.c.b16 %v865, %v863
        %v888 = vpack.c.b16 %v866, %v864
        %v889 = vpack.c.b16 %v869, %v867
        %v890 = vpack.c.b16 %v870, %v868
        %v891 = vpack.c.b16 %v873, %v871
        %v892 = vpack.c.b16 %v874, %v872
        %v909 = vsel %vm700, %v557, 0
        %v911 = vsel %vm700, %v559, 0
        %v914 = vsel %vm700, %v817, 0
        %v917 = vsel %vm710, %v891, 0
        %v920 = vsel %vm710, %v892, 0
        %922 = vmatpush.bf16.msra.mxu0 %v889
        %923 = vmatpush.bf16.msra.mxu0 %v887
        %924 = vmatpush.bf16.msra.mxu0 %v885
        %925 = vmatpush.bf16.msra.mxu0 %v883
        %926 = vmatpush.bf16.msra.mxu0 %v881
        %927 = vmatpush.bf16.msra.mxu0 %v879
        %928 = vmatpush.bf16.msra.mxu0 %v877
        %929 = vmatpush.bf16.msra.mxu0 %v875
        %930 = vmatmul.bf16.gmra.mxu0 %v556
        %v931 = vpop.f32.mrf.mxu0
        %v932 = vadd.f32 %v751, %v931
        %v933 = vpop.f32.mrf.mxu0
        %v934 = vadd.f32 %v753, %v933
        %935 = vmatmul.bf16.gmra.mxu0 %v558
        %v936 = vpop.f32.mrf.mxu0
        %v937 = vadd.f32 %v756, %v936
        %v938 = vpop.f32.mrf.mxu0
        %v939 = vadd.f32 %v758, %v938
        %940 = vmatmul.bf16.gmra.mxu0 %v816
        %v941 = vpop.f32.mrf.mxu0
        %v942 = vadd.f32 %v761, %v941
        %v943 = vpop.f32.mrf.mxu0
        %v944 = vadd.f32 %v763, %v943
        %945 = vdwg.mxu0
        %946 = vmatpush.bf16.msra.mxu0 0
        %947 = vmatpush.bf16.msra.mxu0 0
        %948 = vmatpush.bf16.msra.mxu0 0
        %949 = vmatpush.bf16.msra.mxu0 0
        %950 = vmatpush.bf16.msra.mxu0 0
        %951 = vmatpush.bf16.msra.mxu0 0
        %952 = vmatpush.bf16.msra.mxu0 0
        %953 = vmatpush.bf16.msra.mxu0 %v917
        %954 = vmatmul.bf16.gmra.mxu0 %v909
        %v955 = vpop.f32.mrf.mxu0
        %v956 = vadd.f32 %v932, %v955
        %v957 = vpop.f32.mrf.mxu0
        %v958 = vadd.f32 %v934, %v957
        %959 = vmatmul.bf16.gmra.mxu0 %v911
        %v960 = vpop.f32.mrf.mxu0
        %v961 = vadd.f32 %v937, %v960
        %v962 = vpop.f32.mrf.mxu0
        %v963 = vadd.f32 %v939, %v962
        %964 = vmatmul.bf16.gmra.mxu0 %v914
        %v965 = vpop.f32.mrf.mxu0
        %v966 = vadd.f32 %v942, %v965
        %v967 = vpop.f32.mrf.mxu0
        %v968 = vadd.f32 %v944, %v967
        %969 = vdwg.mxu0
        %970 = vmatpush.bf16.msra.mxu0 %v890
        %971 = vmatpush.bf16.msra.mxu0 %v888
        %972 = vmatpush.bf16.msra.mxu0 %v886
        %973 = vmatpush.bf16.msra.mxu0 %v884
        %974 = vmatpush.bf16.msra.mxu0 %v882
        %975 = vmatpush.bf16.msra.mxu0 %v880
        %976 = vmatpush.bf16.msra.mxu0 %v878
        %977 = vmatpush.bf16.msra.mxu0 %v876
        %978 = vmatmul.bf16.gmra.mxu0 %v556
        %v979 = vpop.f32.mrf.mxu0
        %v980 = vadd.f32 %v799, %v979
        %v981 = vpop.f32.mrf.mxu0
        %v982 = vadd.f32 %v801, %v981
        %983 = vmatmul.bf16.gmra.mxu0 %v558
        %v984 = vpop.f32.mrf.mxu0
        %v985 = vadd.f32 %v804, %v984
        %v986 = vpop.f32.mrf.mxu0
        %v987 = vadd.f32 %v806, %v986
        %988 = vmatmul.bf16.gmra.mxu0 %v816
        %v989 = vpop.f32.mrf.mxu0
        %v990 = vadd.f32 %v809, %v989
        %v991 = vpop.f32.mrf.mxu0
        %v992 = vadd.f32 %v811, %v991
        %993 = vdwg.mxu0
        %994 = vmatpush.bf16.msra.mxu0 0
        %995 = vmatpush.bf16.msra.mxu0 0
        %996 = vmatpush.bf16.msra.mxu0 0
        %997 = vmatpush.bf16.msra.mxu0 0
        %998 = vmatpush.bf16.msra.mxu0 0
        %999 = vmatpush.bf16.msra.mxu0 0
        %1000 = vmatpush.bf16.msra.mxu0 0
        %1001 = vmatpush.bf16.msra.mxu0 %v920
        %1002 = vmatmul.bf16.gmra.mxu0 %v909
        %v1003 = vpop.f32.mrf.mxu0
        %v1004 = vadd.f32 %v980, %v1003
        %v1005 = vpop.f32.mrf.mxu0
        %v1006 = vadd.f32 %v982, %v1005
        %1007 = vmatmul.bf16.gmra.mxu0 %v911
        %v1008 = vpop.f32.mrf.mxu0
        %v1009 = vadd.f32 %v985, %v1008
        %v1010 = vpop.f32.mrf.mxu0
        %v1011 = vadd.f32 %v987, %v1010
        %1012 = vmatmul.bf16.gmra.mxu0 %v914
        %v1013 = vpop.f32.mrf.mxu0
        %v1014 = vadd.f32 %v990, %v1013
        %v1015 = vpop.f32.mrf.mxu0
        %v1016 = vadd.f32 %v992, %v1015
        %1017 = vdwg.mxu0
        %s1018 = scalar_lea.vmem %s1, 288
        %v1019 = vld [vmem:[%s1018] sm:$0xff]
        %v1020 = vld [vmem:[%s1018 + $0x8] sm:$0xff]
        %v1021 = vld [vmem:[%s1018 + $0x10] sm:$0xff]
        %v1022 = vld [vmem:[%s1018 + $0x18] sm:$0xff]
        %v1023 = vld [vmem:[%s1018 + $0x20] sm:$0xff]
        %v1024 = vld [vmem:[%s1018 + $0x28] sm:$0xff]
        %v1025 = vld [vmem:[%s1018 + $0x30] sm:$0xff]
        %v1026 = vld [vmem:[%s1018 + $0x38] sm:$0xff]
        %v1027 = vld [vmem:[%s1018 + $0x40] sm:$0xff]
        %v1028 = vld [vmem:[%s1018 + $0x48] sm:$0xff]
        %v1029 = vld [vmem:[%s1018 + $0x50] sm:$0xff]
        %v1030 = vld [vmem:[%s1018 + $0x58] sm:$0xff]
        %v1031 = vld [vmem:[%s1018 + $0x60] sm:$0xff]
        %v1032 = vld [vmem:[%s1018 + $0x68] sm:$0xff]
        %v1033 = vld [vmem:[%s1018 + $0x70] sm:$0xff]
        %v1034 = vld [vmem:[%s1018 + $0x78] sm:$0xff]
        %v1035 = vld [vmem:[%s1018 + $0x80] sm:$0xff]
        %v1036 = vld [vmem:[%s1018 + $0x88] sm:$0x11]
        %v1038 = vunpack.c.l.b16 %v500
        %v1039 = vunpack.c.h.b16 %v500
        %v1040 = vpack.c.b16 %v546, %v1038
        %v1041 = vpack.c.b16 %v547, %v1039
        %vm1042 = vcmask 1046528
        %v1043 = vrot.slane %v1040, 1
        %v1044 = vrot.slane %v558, 1
        %v1045 = vsel %vm1042, %v1043, %v1044
        %v1046 = vrot.slane %v1041, 1
        %v1047 = vrot.slane %v559, 1
        %v1048 = vsel %vm1042, %v1046, %v1047
        %v1049 = vrot.slane %v560, 1
        %v1050 = vsel %vm1042, %v1044, %v1049
        %v1051 = vrot.slane %v561, 1
        %v1052 = vsel %vm1042, %v1047, %v1051
        %v1074 = vunpack.c.l.b16 %v1019
        %v1075 = vunpack.c.h.b16 %v1019
        %v1076 = vunpack.c.l.b16 %v1020
        %v1077 = vunpack.c.h.b16 %v1020
        %v1078 = vunpack.c.l.b16 %v1021
        %v1079 = vunpack.c.h.b16 %v1021
        %v1080 = vunpack.c.l.b16 %v1022
        %v1081 = vunpack.c.h.b16 %v1022
        %v1082 = vunpack.c.l.b16 %v1023
        %v1083 = vunpack.c.h.b16 %v1023
        %v1084 = vunpack.c.l.b16 %v1024
        %v1085 = vunpack.c.h.b16 %v1024
        %v1086 = vunpack.c.l.b16 %v1025
        %v1087 = vunpack.c.h.b16 %v1025
        %v1088 = vunpack.c.l.b16 %v1026
        %v1089 = vunpack.c.h.b16 %v1026
        %v1090 = vunpack.c.l.b16 %v1027
        %v1091 = vunpack.c.h.b16 %v1027
        %v1092 = vunpack.c.l.b16 %v1028
        %v1093 = vunpack.c.h.b16 %v1028
        %v1094 = vunpack.c.l.b16 %v1029
        %v1095 = vunpack.c.h.b16 %v1029
        %v1096 = vunpack.c.l.b16 %v1030
        %v1097 = vunpack.c.h.b16 %v1030
        %v1098 = vunpack.c.l.b16 %v1031
        %v1099 = vunpack.c.h.b16 %v1031
        %v1100 = vunpack.c.l.b16 %v1032
        %v1101 = vunpack.c.h.b16 %v1032
        %v1102 = vunpack.c.l.b16 %v1033
        %v1103 = vunpack.c.h.b16 %v1033
        %v1104 = vunpack.c.l.b16 %v1034
        %v1105 = vunpack.c.h.b16 %v1034
        %v1106 = vunpack.c.l.b16 %v1035
        %v1107 = vunpack.c.h.b16 %v1035
        %v1108 = vunpack.c.l.b16 %v1036
        %v1109 = vunpack.c.h.b16 %v1036
        %v1110 = vpack.c.b16 %v1076, %v1074
        %v1111 = vpack.c.b16 %v1077, %v1075
        %v1112 = vpack.c.b16 %v1080, %v1078
        %v1113 = vpack.c.b16 %v1081, %v1079
        %v1114 = vpack.c.b16 %v1084, %v1082
        %v1115 = vpack.c.b16 %v1085, %v1083
        %v1116 = vpack.c.b16 %v1088, %v1086
        %v1117 = vpack.c.b16 %v1089, %v1087
        %v1118 = vpack.c.b16 %v1092, %v1090
        %v1119 = vpack.c.b16 %v1093, %v1091
        %v1120 = vpack.c.b16 %v1096, %v1094
        %v1121 = vpack.c.b16 %v1097, %v1095
        %v1122 = vpack.c.b16 %v1100, %v1098
        %v1123 = vpack.c.b16 %v1101, %v1099
        %v1124 = vpack.c.b16 %v1104, %v1102
        %v1125 = vpack.c.b16 %v1105, %v1103
        %v1126 = vpack.c.b16 %v1108, %v1106
        %v1127 = vpack.c.b16 %v1109, %v1107
        %v1145 = vsel %vm700, %v1048, 0
        %v1148 = vsel %vm700, %v1052, 0
        %v1151 = vsel %vm700, %v1051, 0
        %v1154 = vsel %vm710, %v1126, 0
        %v1157 = vsel %vm710, %v1127, 0
        %1159 = vmatpush.bf16.msra.mxu0 %v1124
        %1160 = vmatpush.bf16.msra.mxu0 %v1122
        %1161 = vmatpush.bf16.msra.mxu0 %v1120
        %1162 = vmatpush.bf16.msra.mxu0 %v1118
        %1163 = vmatpush.bf16.msra.mxu0 %v1116
        %1164 = vmatpush.bf16.msra.mxu0 %v1114
        %1165 = vmatpush.bf16.msra.mxu0 %v1112
        %1166 = vmatpush.bf16.msra.mxu0 %v1110
        %1167 = vmatmul.bf16.gmra.mxu0 %v1045
        %v1168 = vpop.f32.mrf.mxu0
        %v1169 = vadd.f32 0.0, %v1168
        %v1170 = vpop.f32.mrf.mxu0
        %v1171 = vadd.f32 0.0, %v1170
        %1172 = vmatmul.bf16.gmra.mxu0 %v1050
        %v1173 = vpop.f32.mrf.mxu0
        %v1174 = vadd.f32 0.0, %v1173
        %v1175 = vpop.f32.mrf.mxu0
        %v1176 = vadd.f32 0.0, %v1175
        %1177 = vmatmul.bf16.gmra.mxu0 %v1049
        %v1178 = vpop.f32.mrf.mxu0
        %v1179 = vadd.f32 0.0, %v1178
        %v1180 = vpop.f32.mrf.mxu0
        %v1181 = vadd.f32 0.0, %v1180
        %1182 = vdwg.mxu0
        %1183 = vmatpush.bf16.msra.mxu0 0
        %1184 = vmatpush.bf16.msra.mxu0 0
        %1185 = vmatpush.bf16.msra.mxu0 0
        %1186 = vmatpush.bf16.msra.mxu0 0
        %1187 = vmatpush.bf16.msra.mxu0 0
        %1188 = vmatpush.bf16.msra.mxu0 0
        %1189 = vmatpush.bf16.msra.mxu0 0
        %1190 = vmatpush.bf16.msra.mxu0 %v1154
        %1191 = vmatmul.bf16.gmra.mxu0 %v1145
        %v1192 = vpop.f32.mrf.mxu0
        %v1193 = vadd.f32 %v1169, %v1192
        %v1194 = vpop.f32.mrf.mxu0
        %v1195 = vadd.f32 %v1171, %v1194
        %1196 = vmatmul.bf16.gmra.mxu0 %v1148
        %v1197 = vpop.f32.mrf.mxu0
        %v1198 = vadd.f32 %v1174, %v1197
        %v1199 = vpop.f32.mrf.mxu0
        %v1200 = vadd.f32 %v1176, %v1199
        %1201 = vmatmul.bf16.gmra.mxu0 %v1151
        %v1202 = vpop.f32.mrf.mxu0
        %v1203 = vadd.f32 %v1179, %v1202
        %v1204 = vpop.f32.mrf.mxu0
        %v1205 = vadd.f32 %v1181, %v1204
        %1206 = vdwg.mxu0
        %1207 = vmatpush.bf16.msra.mxu0 %v1125
        %1208 = vmatpush.bf16.msra.mxu0 %v1123
        %1209 = vmatpush.bf16.msra.mxu0 %v1121
        %1210 = vmatpush.bf16.msra.mxu0 %v1119
        %1211 = vmatpush.bf16.msra.mxu0 %v1117
        %1212 = vmatpush.bf16.msra.mxu0 %v1115
        %1213 = vmatpush.bf16.msra.mxu0 %v1113
        %1214 = vmatpush.bf16.msra.mxu0 %v1111
        %1215 = vmatmul.bf16.gmra.mxu0 %v1045
        %v1216 = vpop.f32.mrf.mxu0
        %v1217 = vadd.f32 0.0, %v1216
        %v1218 = vpop.f32.mrf.mxu0
        %v1219 = vadd.f32 0.0, %v1218
        %1220 = vmatmul.bf16.gmra.mxu0 %v1050
        %v1221 = vpop.f32.mrf.mxu0
        %v1222 = vadd.f32 0.0, %v1221
        %v1223 = vpop.f32.mrf.mxu0
        %v1224 = vadd.f32 0.0, %v1223
        %1225 = vmatmul.bf16.gmra.mxu0 %v1049
        %v1226 = vpop.f32.mrf.mxu0
        %v1227 = vadd.f32 0.0, %v1226
        %v1228 = vpop.f32.mrf.mxu0
        %v1229 = vadd.f32 0.0, %v1228
        %1230 = vdwg.mxu0
        %1231 = vmatpush.bf16.msra.mxu0 0
        %1232 = vmatpush.bf16.msra.mxu0 0
        %1233 = vmatpush.bf16.msra.mxu0 0
        %1234 = vmatpush.bf16.msra.mxu0 0
        %1235 = vmatpush.bf16.msra.mxu0 0
        %1236 = vmatpush.bf16.msra.mxu0 0
        %1237 = vmatpush.bf16.msra.mxu0 0
        %1238 = vmatpush.bf16.msra.mxu0 %v1157
        %1239 = vmatmul.bf16.gmra.mxu0 %v1145
        %v1240 = vpop.f32.mrf.mxu0
        %v1241 = vadd.f32 %v1217, %v1240
        %v1242 = vpop.f32.mrf.mxu0
        %v1243 = vadd.f32 %v1219, %v1242
        %1244 = vmatmul.bf16.gmra.mxu0 %v1148
        %v1245 = vpop.f32.mrf.mxu0
        %v1246 = vadd.f32 %v1222, %v1245
        %v1247 = vpop.f32.mrf.mxu0
        %v1248 = vadd.f32 %v1224, %v1247
        %1249 = vmatmul.bf16.gmra.mxu0 %v1151
        %v1250 = vpop.f32.mrf.mxu0
        %v1251 = vadd.f32 %v1227, %v1250
        %v1252 = vpop.f32.mrf.mxu0
        %v1253 = vadd.f32 %v1229, %v1252
        %1254 = vdwg.mxu0
        %v1255 = vadd.f32 %v956, %v1193
        %v1256 = vadd.f32 %v1004, %v1241
        %v1257 = vadd.f32 %v958, %v1195
        %v1258 = vadd.f32 %v1006, %v1243
        %v1259 = vadd.f32 %v961, %v1198
        %v1260 = vadd.f32 %v1009, %v1246
        %v1261 = vadd.f32 %v963, %v1200
        %v1262 = vadd.f32 %v1011, %v1248
        %v1263 = vadd.f32 %v966, %v1203
        %v1264 = vadd.f32 %v1014, %v1251
        %v1265 = vadd.f32 %v968, %v1205
        %v1266 = vadd.f32 %v1016, %v1253
        %v1267 = vld [vmem:[%s2] sm:$0x3]
        %v1269 = vperm.slane %v1267, 0
        %v1270 = vperm.slane %v1267, 1
        %v1273 = vadd.f32 %v1255, %v1269
        %v1274 = vadd.f32 %v1256, %v1270
        %v1275 = vadd.f32 %v1257, %v1269
        %v1276 = vadd.f32 %v1258, %v1270
        %v1277 = vadd.f32 %v1259, %v1269
        %v1278 = vadd.f32 %v1260, %v1270
        %v1279 = vadd.f32 %v1261, %v1269
        %v1280 = vadd.f32 %v1262, %v1270
        %v1281 = vadd.f32 %v1263, %v1269
        %v1282 = vadd.f32 %v1264, %v1270
        %v1283 = vadd.f32 %v1265, %v1269
        %v1284 = vadd.f32 %v1266, %v1270
        %v1285 = vmax.f32 %v1273, 0.0
        %v1286 = vmax.f32 %v1274, 0.0
        %v1287 = vmax.f32 %v1275, 0.0
        %v1288 = vmax.f32 %v1276, 0.0
        %v1289 = vmax.f32 %v1277, 0.0
        %v1290 = vmax.f32 %v1278, 0.0
        %v1291 = vmax.f32 %v1279, 0.0
        %v1292 = vmax.f32 %v1280, 0.0
        %v1293 = vmax.f32 %v1281, 0.0
        %v1294 = vmax.f32 %v1282, 0.0
        %v1295 = vmax.f32 %v1283, 0.0
        %v1296 = vmax.f32 %v1284, 0.0
        %v1297 = vpack.c.bf16 %v1287, %v1285
        %v1298 = vpack.c.bf16 %v1288, %v1286
        %v1299 = vpack.c.bf16 %v1291, %v1289
        %v1300 = vpack.c.bf16 %v1292, %v1290
        %v1301 = vpack.c.bf16 %v1295, %v1293
        %v1302 = vpack.c.bf16 %v1296, %v1294
        %v1303 = vld [vmem:[%s3] sm:$0xf]
        %v1304 = vld [vmem:[%s3 + $0x4] sm:$0xf]
        %v1305 = vld [vmem:[%s3 + $0x8] sm:$0xf]
        %v1306 = vld [vmem:[%s3 + $0xc] sm:$0xf]
        %v1307 = vld [vmem:[%s3 + $0x10] sm:$0xf]
        %v1308 = vld [vmem:[%s3 + $0x14] sm:$0xf]
        %v1315 = vunpack.c.l.b16 %v1303
        %v1316 = vunpack.c.l.b16 %v1304
        %v1317 = vunpack.c.l.b16 %v1305
        %v1318 = vunpack.c.l.b16 %v1306
        %v1319 = vunpack.c.l.b16 %v1307
        %v1320 = vunpack.c.l.b16 %v1308
        %v1321 = vpack.c.b16 %v1316, %v1315
        %v1322 = vpack.c.b16 %v1318, %v1317
        %v1323 = vpack.c.b16 %v1320, %v1319
        %vm1324 = vcmask 359424
        %v1326 = vsel %vm1324, %v1321, 0
        %v1329 = vsel %vm1324, %v1322, 0
        %v1332 = vsel %vm1324, %v1323, 0
        %vm1334 = vcmask 1045504
        %v1336 = vsel %vm1334, %v1301, 0
        %v1339 = vsel %vm1334, %v1302, 0
        %1341 = vmatpush.bf16.msra.mxu0 0
        %1342 = vmatpush.bf16.msra.mxu0 0
        %1343 = vmatpush.bf16.msra.mxu0 0
        %1344 = vmatpush.bf16.msra.mxu0 0
        %1345 = vmatpush.bf16.msra.mxu0 0
        %1346 = vmatpush.bf16.msra.mxu0 %v1336
        %1347 = vmatpush.bf16.msra.mxu0 %v1299
        %1348 = vmatpush.bf16.msra.mxu0 %v1297
        %1349 = vmatmul.bf16.gmra.mxu0 %v1326
        %v1350 = vpop.f32.mrf.mxu0
        %v1351 = vadd.f32 0.0, %v1350
        %v1352 = vpop.f32.mrf.mxu0
        %v1353 = vadd.f32 0.0, %v1352
        %1354 = vmatmul.bf16.gmra.mxu0 %v1329
        %v1355 = vpop.f32.mrf.mxu0
        %v1356 = vadd.f32 0.0, %v1355
        %v1357 = vpop.f32.mrf.mxu0
        %v1358 = vadd.f32 0.0, %v1357
        %1359 = vmatmul.bf16.gmra.mxu0 %v1332
        %v1360 = vpop.f32.mrf.mxu0
        %v1361 = vadd.f32 0.0, %v1360
        %v1362 = vpop.f32.mrf.mxu0
        %v1363 = vadd.f32 0.0, %v1362
        %1364 = vdwg.mxu0
        %1365 = vmatpush.bf16.msra.mxu0 0
        %1366 = vmatpush.bf16.msra.mxu0 0
        %1367 = vmatpush.bf16.msra.mxu0 0
        %1368 = vmatpush.bf16.msra.mxu0 0
        %1369 = vmatpush.bf16.msra.mxu0 0
        %1370 = vmatpush.bf16.msra.mxu0 %v1339
        %1371 = vmatpush.bf16.msra.mxu0 %v1300
        %1372 = vmatpush.bf16.msra.mxu0 %v1298
        %1373 = vmatmul.bf16.gmra.mxu0 %v1326
        %v1374 = vpop.f32.mrf.mxu0
        %v1375 = vadd.f32 0.0, %v1374
        %v1376 = vpop.f32.mrf.mxu0
        %v1377 = vadd.f32 0.0, %v1376
        %1378 = vmatmul.bf16.gmra.mxu0 %v1329
        %v1379 = vpop.f32.mrf.mxu0
        %v1380 = vadd.f32 0.0, %v1379
        %v1381 = vpop.f32.mrf.mxu0
        %v1382 = vadd.f32 0.0, %v1381
        %1383 = vmatmul.bf16.gmra.mxu0 %v1332
        %v1384 = vpop.f32.mrf.mxu0
        %v1385 = vadd.f32 0.0, %v1384
        %v1386 = vpop.f32.mrf.mxu0
        %v1387 = vadd.f32 0.0, %v1386
        %1388 = vdwg.mxu0
        %v1389 = vmax.f32 %v1351, %v1358
        %v1390 = vmax.f32 %v1375, %v1382
        %v1391 = vmax.f32 %v1353, %v1361
        %v1392 = vmax.f32 %v1377, %v1385
        %v1393 = vmax.f32 %v1356, %v1363
        %v1394 = vmax.f32 %v1380, %v1387
        %v1395 = vpack.c.bf16 %v1391, %v1389
        %v1396 = vpack.c.bf16 %v1392, %v1390
        %v1397 = vpack.c.bf16 %v1393, %v1393
        %v1398 = vpack.c.bf16 %v1394, %v1394
        %v1399 = vld [vmem:[%s4] sm:$0xff]
        %v1400 = vld [vmem:[%s4 + $0x8] sm:$0xff]
        %v1401 = vld [vmem:[%s4 + $0x10] sm:$0xff]
        %v1402 = vld [vmem:[%s4 + $0x18] sm:$0xff]
        %v1403 = vld [vmem:[%s4 + $0x20] sm:$0xff]
        %v1404 = vld [vmem:[%s4 + $0x28] sm:$0xff]
        %v1405 = vld [vmem:[%s4 + $0x30] sm:$0xff]
        %v1406 = vld [vmem:[%s4 + $0x38] sm:$0xff]
        %v1407 = vld [vmem:[%s4 + $0x40] sm:$0xff]
        %v1408 = vld [vmem:[%s4 + $0x48] sm:$0xff]
        %v1409 = vld [vmem:[%s4 + $0x50] sm:$0xff]
        %v1410 = vld [vmem:[%s4 + $0x58] sm:$0xff]
        %v1411 = vld [vmem:[%s4 + $0x60] sm:$0xff]
        %v1412 = vld [vmem:[%s4 + $0x68] sm:$0xff]
        %v1413 = vld [vmem:[%s4 + $0x70] sm:$0xff]
        %v1414 = vld [vmem:[%s4 + $0x78] sm:$0xff]
        %v1415 = vld [vmem:[%s4 + $0x80] sm:$0xff]
        %v1416 = vld [vmem:[%s4 + $0x88] sm:$0xff]
        %v1417 = vld [vmem:[%s4 + $0x90] sm:$0xff]
        %v1418 = vld [vmem:[%s4 + $0x98] sm:$0xff]
        %v1419 = vld [vmem:[%s4 + $0xa0] sm:$0xff]
        %v1420 = vld [vmem:[%s4 + $0xa8] sm:$0xff]
        %v1443 = vunpack.c.l.b16 %v1399
        %v1444 = vunpack.c.h.b16 %v1399
        %v1445 = vunpack.c.l.b16 %v1400
        %v1446 = vunpack.c.h.b16 %v1400
        %v1447 = vunpack.c.l.b16 %v1401
        %v1448 = vunpack.c.h.b16 %v1401
        %v1449 = vunpack.c.l.b16 %v1402
        %v1450 = vunpack.c.h.b16 %v1402
        %v1451 = vunpack.c.l.b16 %v1403
        %v1452 = vunpack.c.h.b16 %v1403
        %v1453 = vunpack.c.l.b16 %v1404
        %v1454 = vunpack.c.h.b16 %v1404
        %v1455 = vunpack.c.l.b16 %v1405
        %v1456 = vunpack.c.h.b16 %v1405
        %v1457 = vunpack.c.l.b16 %v1406
        %v1458 = vunpack.c.h.b16 %v1406
        %v1459 = vunpack.c.l.b16 %v1407
        %v1460 = vunpack.c.h.b16 %v1407
        %v1461 = vunpack.c.l.b16 %v1408
        %v1462 = vunpack.c.h.b16 %v1408
        %v1463 = vunpack.c.l.b16 %v1409
        %v1464 = vunpack.c.h.b16 %v1409
        %v1465 = vunpack.c.l.b16 %v1410
        %v1466 = vunpack.c.h.b16 %v1410
        %v1467 = vunpack.c.l.b16 %v1411
        %v1468 = vunpack.c.h.b16 %v1411
        %v1469 = vunpack.c.l.b16 %v1412
        %v1470 = vunpack.c.h.b16 %v1412
        %v1471 = vunpack.c.l.b16 %v1413
        %v1472 = vunpack.c.h.b16 %v1413
        %v1473 = vunpack.c.l.b16 %v1414
        %v1474 = vunpack.c.h.b16 %v1414
        %v1475 = vunpack.c.l.b16 %v1415
        %v1476 = vunpack.c.h.b16 %v1415
        %v1477 = vunpack.c.l.b16 %v1416
        %v1478 = vunpack.c.h.b16 %v1416
        %v1479 = vunpack.c.l.b16 %v1417
        %v1480 = vunpack.c.h.b16 %v1417
        %v1481 = vunpack.c.l.b16 %v1418
        %v1482 = vunpack.c.h.b16 %v1418
        %v1483 = vunpack.c.l.b16 %v1419
        %v1484 = vunpack.c.h.b16 %v1419
        %v1485 = vunpack.c.l.b16 %v1420
        %v1486 = vunpack.c.h.b16 %v1420
        %v1487 = vpack.c.b16 %v1445, %v1443
        %v1488 = vpack.c.b16 %v1446, %v1444
        %v1489 = vpack.c.b16 %v1449, %v1447
        %v1490 = vpack.c.b16 %v1450, %v1448
        %v1491 = vpack.c.b16 %v1453, %v1451
        %v1492 = vpack.c.b16 %v1454, %v1452
        %v1493 = vpack.c.b16 %v1457, %v1455
        %v1494 = vpack.c.b16 %v1458, %v1456
        %v1495 = vpack.c.b16 %v1461, %v1459
        %v1496 = vpack.c.b16 %v1462, %v1460
        %v1497 = vpack.c.b16 %v1465, %v1463
        %v1498 = vpack.c.b16 %v1466, %v1464
        %v1499 = vpack.c.b16 %v1469, %v1467
        %v1500 = vpack.c.b16 %v1470, %v1468
        %v1501 = vpack.c.b16 %v1473, %v1471
        %v1502 = vpack.c.b16 %v1474, %v1472
        %v1503 = vpack.c.b16 %v1477, %v1475
        %v1504 = vpack.c.b16 %v1478, %v1476
        %v1505 = vpack.c.b16 %v1481, %v1479
        %v1506 = vpack.c.b16 %v1482, %v1480
        %v1507 = vpack.c.b16 %v1485, %v1483
        %v1508 = vpack.c.b16 %v1486, %v1484
        %vm1531 = vcmask 392192
        %v1533 = vsel %vm1531, %v1396, 0
        %v1536 = vsel %vm1531, %v1398, 0
        %1538 = vmatpush.bf16.msra.mxu0 %v1501
        %1539 = vmatpush.bf16.msra.mxu0 %v1499
        %1540 = vmatpush.bf16.msra.mxu0 %v1497
        %1541 = vmatpush.bf16.msra.mxu0 %v1495
        %1542 = vmatpush.bf16.msra.mxu0 %v1493
        %1543 = vmatpush.bf16.msra.mxu0 %v1491
        %1544 = vmatpush.bf16.msra.mxu0 %v1489
        %1545 = vmatpush.bf16.msra.mxu0 %v1487
        %1546 = vmatmul.bf16.gmra.mxu0 %v1395
        %v1547 = vpop.f32.mrf.mxu0
        %v1548 = vadd.f32 0.0, %v1547
        %v1549 = vpop.f32.mrf.mxu0
        %v1550 = vadd.f32 0.0, %v1549
        %1551 = vmatmul.bf16.gmra.mxu0 %v1397
        %v1552 = vpop.f32.mrf.mxu0
        %v1553 = vadd.f32 0.0, %v1552
        %v1554 = vpop.f32.mrf.mxu0
        %1555 = vdwg.mxu0
        %1556 = vmatpush.bf16.msra.mxu0 0
        %1557 = vmatpush.bf16.msra.mxu0 0
        %1558 = vmatpush.bf16.msra.mxu0 0
        %1559 = vmatpush.bf16.msra.mxu0 0
        %1560 = vmatpush.bf16.msra.mxu0 0
        %1561 = vmatpush.bf16.msra.mxu0 %v1507
        %1562 = vmatpush.bf16.msra.mxu0 %v1505
        %1563 = vmatpush.bf16.msra.mxu0 %v1503
        %1564 = vmatmul.bf16.gmra.mxu0 %v1533
        %v1565 = vpop.f32.mrf.mxu0
        %v1566 = vadd.f32 %v1548, %v1565
        %v1567 = vpop.f32.mrf.mxu0
        %v1568 = vadd.f32 %v1550, %v1567
        %1569 = vmatmul.bf16.gmra.mxu0 %v1536
        %v1570 = vpop.f32.mrf.mxu0
        %v1571 = vadd.f32 %v1553, %v1570
        %v1572 = vpop.f32.mrf.mxu0
        %1573 = vdwg.mxu0
        %1574 = vmatpush.bf16.msra.mxu0 %v1502
        %1575 = vmatpush.bf16.msra.mxu0 %v1500
        %1576 = vmatpush.bf16.msra.mxu0 %v1498
        %1577 = vmatpush.bf16.msra.mxu0 %v1496
        %1578 = vmatpush.bf16.msra.mxu0 %v1494
        %1579 = vmatpush.bf16.msra.mxu0 %v1492
        %1580 = vmatpush.bf16.msra.mxu0 %v1490
        %1581 = vmatpush.bf16.msra.mxu0 %v1488
        %1582 = vmatmul.bf16.gmra.mxu0 %v1395
        %v1583 = vpop.f32.mrf.mxu0
        %v1584 = vadd.f32 0.0, %v1583
        %v1585 = vpop.f32.mrf.mxu0
        %v1586 = vadd.f32 0.0, %v1585
        %1587 = vmatmul.bf16.gmra.mxu0 %v1397
        %v1588 = vpop.f32.mrf.mxu0
        %v1589 = vadd.f32 0.0, %v1588
        %v1590 = vpop.f32.mrf.mxu0
        %1591 = vdwg.mxu0
        %1592 = vmatpush.bf16.msra.mxu0 0
        %1593 = vmatpush.bf16.msra.mxu0 0
        %1594 = vmatpush.bf16.msra.mxu0 0
        %1595 = vmatpush.bf16.msra.mxu0 0
        %1596 = vmatpush.bf16.msra.mxu0 0
        %1597 = vmatpush.bf16.msra.mxu0 %v1508
        %1598 = vmatpush.bf16.msra.mxu0 %v1506
        %1599 = vmatpush.bf16.msra.mxu0 %v1504
        %1600 = vmatmul.bf16.gmra.mxu0 %v1533
        %v1601 = vpop.f32.mrf.mxu0
        %v1602 = vadd.f32 %v1584, %v1601
        %v1603 = vpop.f32.mrf.mxu0
        %v1604 = vadd.f32 %v1586, %v1603
        %1605 = vmatmul.bf16.gmra.mxu0 %v1536
        %v1606 = vpop.f32.mrf.mxu0
        %v1607 = vadd.f32 %v1589, %v1606
        %v1608 = vpop.f32.mrf.mxu0
        %1609 = vdwg.mxu0
        %v1610 = vmax.f32 %v1566, %v1602
        %v1611 = vmax.f32 %v1568, %v1604
        %v1612 = vmax.f32 %v1571, %v1607
        %v1613 = vpack.c.bf16 %v1611, %v1610
        %v1614 = vpack.c.bf16 %v1612, %v1612
        %v1615 = vld [vmem:[%s5] sm:$0xf]
        %v1616 = vld [vmem:[%s5 + $0x4] sm:$0xf]
        %v1617 = vld [vmem:[%s5 + $0x8] sm:$0xf]
        %v1618 = vld [vmem:[%s5 + $0xc] sm:$0xf]
        %v1619 = vld [vmem:[%s5 + $0x10] sm:$0xf]
        %v1620 = vld [vmem:[%s5 + $0x14] sm:$0xf]
        %v1621 = vld [vmem:[%s5 + $0x18] sm:$0xf]
        %v1622 = vld [vmem:[%s5 + $0x1c] sm:$0xf]
        %v1623 = vld [vmem:[%s5 + $0x20] sm:$0xf]
        %v1624 = vld [vmem:[%s5 + $0x24] sm:$0xf]
        %v1625 = vld [vmem:[%s5 + $0x28] sm:$0xf]
        %v1626 = vld [vmem:[%s5 + $0x2c] sm:$0xf]
        %v1627 = vld [vmem:[%s5 + $0x30] sm:$0xf]
        %v1628 = vld [vmem:[%s5 + $0x34] sm:$0xf]
        %v1629 = vld [vmem:[%s5 + $0x38] sm:$0xf]
        %v1630 = vld [vmem:[%s5 + $0x3c] sm:$0xf]
        %s1631 = scalar_lea.vmem %s5, 64
        %v1632 = vld [vmem:[%s1631] sm:$0xf]
        %v1633 = vld [vmem:[%s1631 + $0x4] sm:$0xf]
        %v1634 = vld [vmem:[%s1631 + $0x8] sm:$0xf]
        %v1635 = vld [vmem:[%s1631 + $0xc] sm:$0xf]
        %v1636 = vld [vmem:[%s1631 + $0x10] sm:$0xf]
        %v1637 = vld [vmem:[%s1631 + $0x14] sm:$0xf]
        %v1638 = vld [vmem:[%s1631 + $0x18] sm:$0xf]
        %v1639 = vld [vmem:[%s1631 + $0x1c] sm:$0xf]
        %v1640 = vld [vmem:[%s1631 + $0x20] sm:$0xf]
        %v1641 = vld [vmem:[%s1631 + $0x24] sm:$0xf]
        %v1642 = vld [vmem:[%s1631 + $0x28] sm:$0xf]
        %v1643 = vld [vmem:[%s1631 + $0x2c] sm:$0xf]
        %v1644 = vld [vmem:[%s1631 + $0x30] sm:$0xf]
        %v1645 = vld [vmem:[%s1631 + $0x34] sm:$0xf]
        %v1646 = vld [vmem:[%s1631 + $0x38] sm:$0xf]
        %v1647 = vld [vmem:[%s1631 + $0x3c] sm:$0xf]
        %v1649 = vshrl.u32 %v1613, 16
        %v1651 = vshll.u32 %v1613, 16
        %v1653 = vrot.slane %v1651, 1
        %v1654 = vor.u32 %v1649, %v1653
        %v1656 = vshll.u32 %v1614, 16
        %v1658 = vrot.slane %v1656, 1
        %v1659 = vsel %vm562, %v1654, %v1658
        %v1660 = vshrl.u32 %v1614, 16
        %v1662 = vor.u32 %v1660, %v1658
        %v1681 = vunpack.c.l.b16 %v1632
        %v1682 = vunpack.c.l.b16 %v1633
        %v1683 = vunpack.c.l.b16 %v1634
        %v1684 = vunpack.c.l.b16 %v1635
        %v1685 = vunpack.c.l.b16 %v1636
        %v1686 = vunpack.c.l.b16 %v1637
        %v1687 = vunpack.c.l.b16 %v1638
        %v1688 = vunpack.c.l.b16 %v1639
        %v1689 = vunpack.c.l.b16 %v1640
        %v1690 = vunpack.c.l.b16 %v1641
        %v1691 = vunpack.c.l.b16 %v1642
        %v1692 = vunpack.c.l.b16 %v1643
        %v1693 = vunpack.c.l.b16 %v1644
        %v1694 = vunpack.c.l.b16 %v1645
        %v1695 = vunpack.c.l.b16 %v1646
        %v1696 = vunpack.c.l.b16 %v1647
        %v1697 = vpack.c.b16 %v1682, %v1681
        %v1698 = vpack.c.b16 %v1684, %v1683
        %v1699 = vpack.c.b16 %v1686, %v1685
        %v1700 = vpack.c.b16 %v1688, %v1687
        %v1701 = vpack.c.b16 %v1690, %v1689
        %v1702 = vpack.c.b16 %v1692, %v1691
        %v1703 = vpack.c.b16 %v1694, %v1693
        %v1704 = vpack.c.b16 %v1696, %v1695
        %1713 = vmatpush.bf16.msra.mxu0 %v1704
        %1714 = vmatpush.bf16.msra.mxu0 %v1703
        %1715 = vmatpush.bf16.msra.mxu0 %v1702
        %1716 = vmatpush.bf16.msra.mxu0 %v1701
        %1717 = vmatpush.bf16.msra.mxu0 %v1700
        %1718 = vmatpush.bf16.msra.mxu0 %v1699
        %1719 = vmatpush.bf16.msra.mxu0 %v1698
        %1720 = vmatpush.bf16.msra.mxu0 %v1697
        %1721 = vmatmul.bf16.gmra.mxu0 %v1659
        %v1722 = vpop.f32.mrf.mxu0
        %v1723 = vadd.f32 0.0, %v1722
        %v1724 = vpop.f32.mrf.mxu0
        %v1725 = vadd.f32 0.0, %v1724
        %1726 = vmatmul.bf16.gmra.mxu0 %v1662
        %v1727 = vpop.f32.mrf.mxu0
        %v1728 = vadd.f32 0.0, %v1727
        %v1729 = vpop.f32.mrf.mxu0
        %1730 = vdwg.mxu0
        %v1747 = vunpack.c.l.b16 %v1615
        %v1748 = vunpack.c.l.b16 %v1616
        %v1749 = vunpack.c.l.b16 %v1617
        %v1750 = vunpack.c.l.b16 %v1618
        %v1751 = vunpack.c.l.b16 %v1619
        %v1752 = vunpack.c.l.b16 %v1620
        %v1753 = vunpack.c.l.b16 %v1621
        %v1754 = vunpack.c.l.b16 %v1622
        %v1755 = vunpack.c.l.b16 %v1623
        %v1756 = vunpack.c.l.b16 %v1624
        %v1757 = vunpack.c.l.b16 %v1625
        %v1758 = vunpack.c.l.b16 %v1626
        %v1759 = vunpack.c.l.b16 %v1627
        %v1760 = vunpack.c.l.b16 %v1628
        %v1761 = vunpack.c.l.b16 %v1629
        %v1762 = vunpack.c.l.b16 %v1630
        %v1763 = vpack.c.b16 %v1748, %v1747
        %v1764 = vpack.c.b16 %v1750, %v1749
        %v1765 = vpack.c.b16 %v1752, %v1751
        %v1766 = vpack.c.b16 %v1754, %v1753
        %v1767 = vpack.c.b16 %v1756, %v1755
        %v1768 = vpack.c.b16 %v1758, %v1757
        %v1769 = vpack.c.b16 %v1760, %v1759
        %v1770 = vpack.c.b16 %v1762, %v1761
        %1779 = vmatpush.bf16.msra.mxu0 %v1770
        %1780 = vmatpush.bf16.msra.mxu0 %v1769
        %1781 = vmatpush.bf16.msra.mxu0 %v1768
        %1782 = vmatpush.bf16.msra.mxu0 %v1767
        %1783 = vmatpush.bf16.msra.mxu0 %v1766
        %1784 = vmatpush.bf16.msra.mxu0 %v1765
        %1785 = vmatpush.bf16.msra.mxu0 %v1764
        %1786 = vmatpush.bf16.msra.mxu0 %v1763
        %1787 = vmatmul.bf16.gmra.mxu0 %v1613
        %v1788 = vpop.f32.mrf.mxu0
        %v1789 = vadd.f32 %v1723, %v1788
        %v1790 = vpop.f32.mrf.mxu0
        %v1791 = vadd.f32 %v1725, %v1790
        %1792 = vmatmul.bf16.gmra.mxu0 %v1614
        %v1793 = vpop.f32.mrf.mxu0
        %v1794 = vadd.f32 %v1728, %v1793
        %v1795 = vpop.f32.mrf.mxu0
        %1796 = vdwg.mxu0
        %s1797 = scalar_lea.vmem %s5, 128
        %v1798 = vld [vmem:[%s1797] sm:$0xf]
        %v1799 = vld [vmem:[%s1797 + $0x4] sm:$0xf]
        %v1800 = vld [vmem:[%s1797 + $0x8] sm:$0xf]
        %v1801 = vld [vmem:[%s1797 + $0xc] sm:$0xf]
        %v1802 = vld [vmem:[%s1797 + $0x10] sm:$0xf]
        %v1803 = vld [vmem:[%s1797 + $0x14] sm:$0xf]
        %v1804 = vld [vmem:[%s1797 + $0x18] sm:$0xf]
        %v1805 = vld [vmem:[%s1797 + $0x1c] sm:$0xf]
        %v1806 = vld [vmem:[%s1797 + $0x20] sm:$0xf]
        %v1807 = vld [vmem:[%s1797 + $0x24] sm:$0xf]
        %v1808 = vld [vmem:[%s1797 + $0x28] sm:$0xf]
        %v1809 = vld [vmem:[%s1797 + $0x2c] sm:$0xf]
        %v1810 = vld [vmem:[%s1797 + $0x30] sm:$0xf]
        %v1811 = vld [vmem:[%s1797 + $0x34] sm:$0xf]
        %v1812 = vld [vmem:[%s1797 + $0x38] sm:$0xf]
        %v1813 = vld [vmem:[%s1797 + $0x3c] sm:$0xf]
        %v1816 = vrot.slane %v1613, 1
        %v1817 = vrot.slane %v1614, 1
        %v1818 = vsel %vm1042, %v1816, %v1817
        %v1837 = vunpack.c.l.b16 %v1798
        %v1838 = vunpack.c.l.b16 %v1799
        %v1839 = vunpack.c.l.b16 %v1800
        %v1840 = vunpack.c.l.b16 %v1801
        %v1841 = vunpack.c.l.b16 %v1802
        %v1842 = vunpack.c.l.b16 %v1803
        %v1843 = vunpack.c.l.b16 %v1804
        %v1844 = vunpack.c.l.b16 %v1805
        %v1845 = vunpack.c.l.b16 %v1806
        %v1846 = vunpack.c.l.b16 %v1807
        %v1847 = vunpack.c.l.b16 %v1808
        %v1848 = vunpack.c.l.b16 %v1809
        %v1849 = vunpack.c.l.b16 %v1810
        %v1850 = vunpack.c.l.b16 %v1811
        %v1851 = vunpack.c.l.b16 %v1812
        %v1852 = vunpack.c.l.b16 %v1813
        %v1853 = vpack.c.b16 %v1838, %v1837
        %v1854 = vpack.c.b16 %v1840, %v1839
        %v1855 = vpack.c.b16 %v1842, %v1841
        %v1856 = vpack.c.b16 %v1844, %v1843
        %v1857 = vpack.c.b16 %v1846, %v1845
        %v1858 = vpack.c.b16 %v1848, %v1847
        %v1859 = vpack.c.b16 %v1850, %v1849
        %v1860 = vpack.c.b16 %v1852, %v1851
        %1869 = vmatpush.bf16.msra.mxu0 %v1860
        %1870 = vmatpush.bf16.msra.mxu0 %v1859
        %1871 = vmatpush.bf16.msra.mxu0 %v1858
        %1872 = vmatpush.bf16.msra.mxu0 %v1857
        %1873 = vmatpush.bf16.msra.mxu0 %v1856
        %1874 = vmatpush.bf16.msra.mxu0 %v1855
        %1875 = vmatpush.bf16.msra.mxu0 %v1854
        %1876 = vmatpush.bf16.msra.mxu0 %v1853
        %1877 = vmatmul.bf16.gmra.mxu0 %v1818
        %v1878 = vpop.f32.mrf.mxu0
        %v1879 = vadd.f32 0.0, %v1878
        %v1880 = vpop.f32.mrf.mxu0
        %v1881 = vadd.f32 0.0, %v1880
        %1882 = vmatmul.bf16.gmra.mxu0 %v1817
        %v1883 = vpop.f32.mrf.mxu0
        %v1884 = vadd.f32 0.0, %v1883
        %v1885 = vpop.f32.mrf.mxu0
        %1886 = vdwg.mxu0
        %v1887 = vadd.f32 %v1789, %v1879
        %v1888 = vadd.f32 %v1791, %v1881
        %v1889 = vadd.f32 %v1794, %v1884
        %v1890 = vld [vmem:[%s6] sm:$0x1]
        %v1892 = vperm.slane %v1890, 0
        %v1894 = vadd.f32 %v1887, %v1892
        %v1895 = vadd.f32 %v1888, %v1892
        %v1896 = vadd.f32 %v1889, %v1892
        %v1897 = vmax.f32 %v1894, 0.0
        %v1898 = vmax.f32 %v1895, 0.0
        %v1899 = vmax.f32 %v1896, 0.0
        %v1900 = vpack.c.bf16 %v1898, %v1897
        %v1901 = vpack.c.bf16 %v1899, %v1899
        %v1902 = vld [vmem:[%s7] sm:$0xf]
        %v1903 = vld [vmem:[%s7 + $0x4] sm:$0xf]
        %v1904 = vld [vmem:[%s7 + $0x8] sm:$0xf]
        %v1905 = vld [vmem:[%s7 + $0xc] sm:$0xf]
        %v1910 = vunpack.c.l.b16 %v1902
        %v1911 = vunpack.c.l.b16 %v1903
        %v1912 = vunpack.c.l.b16 %v1904
        %v1913 = vunpack.c.l.b16 %v1905
        %v1914 = vpack.c.b16 %v1911, %v1910
        %v1915 = vpack.c.b16 %v1913, %v1912
        %vm1916 = vcmask 162816
        %v1918 = vsel %vm1916, %v1914, 0
        %v1921 = vsel %vm1916, %v1915, 0
        %vm1923 = vcmask 1041408
        %v1925 = vsel %vm1923, %v1901, 0
        %1927 = vmatpush.bf16.msra.mxu0 0
        %1928 = vmatpush.bf16.msra.mxu0 0
        %1929 = vmatpush.bf16.msra.mxu0 0
        %1930 = vmatpush.bf16.msra.mxu0 0
        %1931 = vmatpush.bf16.msra.mxu0 0
        %1932 = vmatpush.bf16.msra.mxu0 0
        %1933 = vmatpush.bf16.msra.mxu0 %v1925
        %1934 = vmatpush.bf16.msra.mxu0 %v1900
        %1935 = vmatmul.bf16.gmra.mxu0 %v1918
        %v1936 = vpop.f32.mrf.mxu0
        %v1937 = vadd.f32 0.0, %v1936
        %v1938 = vpop.f32.mrf.mxu0
        %v1939 = vadd.f32 0.0, %v1938
        %1940 = vmatmul.bf16.gmra.mxu0 %v1921
        %v1941 = vpop.f32.mrf.mxu0
        %v1942 = vadd.f32 0.0, %v1941
        %v1943 = vpop.f32.mrf.mxu0
        %v1944 = vadd.f32 0.0, %v1943
        %1945 = vdwg.mxu0
        %v1946 = vmax.f32 %v1937, %v1942
        %v1947 = vmax.f32 %v1939, %v1944
        %v1948 = vpack.c.bf16 %v1947, %v1946
        %v1949 = vld [vmem:[%s8] sm:$0xff]
        %v1950 = vld [vmem:[%s8 + $0x8] sm:$0xff]
        %v1951 = vld [vmem:[%s8 + $0x10] sm:$0xff]
        %v1952 = vld [vmem:[%s8 + $0x18] sm:$0xff]
        %v1953 = vld [vmem:[%s8 + $0x20] sm:$0xff]
        %v1954 = vld [vmem:[%s8 + $0x28] sm:$0xff]
        %v1955 = vld [vmem:[%s8 + $0x30] sm:$0xff]
        %v1956 = vld [vmem:[%s8 + $0x38] sm:$0xff]
        %v1957 = vld [vmem:[%s8 + $0x40] sm:$0xff]
        %v1958 = vld [vmem:[%s8 + $0x48] sm:$0xff]
        %v1969 = vunpack.c.l.b16 %v1949
        %v1970 = vunpack.c.h.b16 %v1949
        %v1971 = vunpack.c.l.b16 %v1950
        %v1972 = vunpack.c.h.b16 %v1950
        %v1973 = vunpack.c.l.b16 %v1951
        %v1974 = vunpack.c.h.b16 %v1951
        %v1975 = vunpack.c.l.b16 %v1952
        %v1976 = vunpack.c.h.b16 %v1952
        %v1977 = vunpack.c.l.b16 %v1953
        %v1978 = vunpack.c.h.b16 %v1953
        %v1979 = vunpack.c.l.b16 %v1954
        %v1980 = vunpack.c.h.b16 %v1954
        %v1981 = vunpack.c.l.b16 %v1955
        %v1982 = vunpack.c.h.b16 %v1955
        %v1983 = vunpack.c.l.b16 %v1956
        %v1984 = vunpack.c.h.b16 %v1956
        %v1985 = vunpack.c.l.b16 %v1957
        %v1986 = vunpack.c.h.b16 %v1957
        %v1987 = vunpack.c.l.b16 %v1958
        %v1988 = vunpack.c.h.b16 %v1958
        %v1989 = vpack.c.b16 %v1971, %v1969
        %v1990 = vpack.c.b16 %v1972, %v1970
        %v1991 = vpack.c.b16 %v1975, %v1973
        %v1992 = vpack.c.b16 %v1976, %v1974
        %v1993 = vpack.c.b16 %v1979, %v1977
        %v1994 = vpack.c.b16 %v1980, %v1978
        %v1995 = vpack.c.b16 %v1983, %v1981
        %v1996 = vpack.c.b16 %v1984, %v1982
        %v1997 = vpack.c.b16 %v1987, %v1985
        %v1998 = vpack.c.b16 %v1988, %v1986
        %vm2009 = vcmask 654336
        %v2011 = vsel %vm2009, %v1948, 0
        %2013 = vmatpush.bf16.msra.mxu0 0
        %2014 = vmatpush.bf16.msra.mxu0 0
        %2015 = vmatpush.bf16.msra.mxu0 0
        %2016 = vmatpush.bf16.msra.mxu0 %v1997
        %2017 = vmatpush.bf16.msra.mxu0 %v1995
        %2018 = vmatpush.bf16.msra.mxu0 %v1993
        %2019 = vmatpush.bf16.msra.mxu0 %v1991
        %2020 = vmatpush.bf16.msra.mxu0 %v1989
        %2021 = vmatmul.bf16.gmra.mxu0 %v2011
        %v2022 = vpop.f32.mrf.mxu0
        %v2023 = vadd.f32 0.0, %v2022
        %v2024 = vpop.f32.mrf.mxu0
        %v2025 = vadd.f32 0.0, %v2024
        %2026 = vdwg.mxu0
        %2027 = vmatpush.bf16.msra.mxu0 0
        %2028 = vmatpush.bf16.msra.mxu0 0
        %2029 = vmatpush.bf16.msra.mxu0 0
        %2030 = vmatpush.bf16.msra.mxu0 %v1998
        %2031 = vmatpush.bf16.msra.mxu0 %v1996
        %2032 = vmatpush.bf16.msra.mxu0 %v1994
        %2033 = vmatpush.bf16.msra.mxu0 %v1992
        %2034 = vmatpush.bf16.msra.mxu0 %v1990
        %2035 = vmatmul.bf16.gmra.mxu0 %v2011
        %v2036 = vpop.f32.mrf.mxu0
        %v2037 = vadd.f32 0.0, %v2036
        %v2038 = vpop.f32.mrf.mxu0
        %v2039 = vadd.f32 0.0, %v2038
        %2040 = vdwg.mxu0
        %v2041 = vmax.f32 %v2023, %v2037
        %v2042 = vmax.f32 %v2025, %v2039
        %v2043 = vpack.c.bf16 %v2041, %v2041
        %v2044 = vpack.c.bf16 %v2042, %v2041
        %v2045 = vld [vmem:[%s9] sm:$0xf]
        %v2046 = vld [vmem:[%s9 + $0x4] sm:$0xf]
        %v2047 = vld [vmem:[%s9 + $0x8] sm:$0xf]
        %v2048 = vld [vmem:[%s9 + $0xc] sm:$0xf]
        %v2049 = vld [vmem:[%s9 + $0x10] sm:$0xf]
        %v2050 = vld [vmem:[%s9 + $0x14] sm:$0xf]
        %v2051 = vld [vmem:[%s9 + $0x18] sm:$0xf]
        %v2052 = vld [vmem:[%s9 + $0x1c] sm:$0xf]
        %v2053 = vld [vmem:[%s9 + $0x20] sm:$0xf]
        %v2054 = vld [vmem:[%s9 + $0x24] sm:$0xf]
        %v2055 = vld [vmem:[%s9 + $0x28] sm:$0xf]
        %v2056 = vld [vmem:[%s9 + $0x2c] sm:$0xf]
        %v2057 = vld [vmem:[%s9 + $0x30] sm:$0xf]
        %v2058 = vld [vmem:[%s9 + $0x34] sm:$0xf]
        %v2059 = vld [vmem:[%s9 + $0x38] sm:$0xf]
        %v2060 = vld [vmem:[%s9 + $0x3c] sm:$0xf]
        %s2061 = scalar_lea.vmem %s9, 64
        %v2062 = vld [vmem:[%s2061] sm:$0xf]
        %v2063 = vld [vmem:[%s2061 + $0x4] sm:$0xf]
        %v2064 = vld [vmem:[%s2061 + $0x8] sm:$0xf]
        %v2065 = vld [vmem:[%s2061 + $0xc] sm:$0xf]
        %v2066 = vld [vmem:[%s2061 + $0x10] sm:$0xf]
        %v2067 = vld [vmem:[%s2061 + $0x14] sm:$0xf]
        %v2068 = vld [vmem:[%s2061 + $0x18] sm:$0xf]
        %v2069 = vld [vmem:[%s2061 + $0x1c] sm:$0xf]
        %v2070 = vld [vmem:[%s2061 + $0x20] sm:$0xf]
        %v2071 = vld [vmem:[%s2061 + $0x24] sm:$0xf]
        %v2072 = vld [vmem:[%s2061 + $0x28] sm:$0xf]
        %v2073 = vld [vmem:[%s2061 + $0x2c] sm:$0xf]
        %v2074 = vld [vmem:[%s2061 + $0x30] sm:$0xf]
        %v2075 = vld [vmem:[%s2061 + $0x34] sm:$0xf]
        %v2076 = vld [vmem:[%s2061 + $0x38] sm:$0xf]
        %v2077 = vld [vmem:[%s2061 + $0x3c] sm:$0xf]
        %v2079 = vshrl.u32 %v2044, 16
        %v2081 = vshll.u32 %v2044, 16
        %v2083 = vrot.slane %v2081, 1
        %v2084 = vor.u32 %v2079, %v2083
        %v2102 = vunpack.c.l.b16 %v2062
        %v2103 = vunpack.c.l.b16 %v2063
        %v2104 = vunpack.c.l.b16 %v2064
        %v2105 = vunpack.c.l.b16 %v2065
        %v2106 = vunpack.c.l.b16 %v2066
        %v2107 = vunpack.c.l.b16 %v2067
        %v2108 = vunpack.c.l.b16 %v2068
        %v2109 = vunpack.c.l.b16 %v2069
        %v2110 = vunpack.c.l.b16 %v2070
        %v2111 = vunpack.c.l.b16 %v2071
        %v2112 = vunpack.c.l.b16 %v2072
        %v2113 = vunpack.c.l.b16 %v2073
        %v2114 = vunpack.c.l.b16 %v2074
        %v2115 = vunpack.c.l.b16 %v2075
        %v2116 = vunpack.c.l.b16 %v2076
        %v2117 = vunpack.c.l.b16 %v2077
        %v2118 = vpack.c.b16 %v2103, %v2102
        %v2119 = vpack.c.b16 %v2105, %v2104
        %v2120 = vpack.c.b16 %v2107, %v2106
        %v2121 = vpack.c.b16 %v2109, %v2108
        %v2122 = vpack.c.b16 %v2111, %v2110
        %v2123 = vpack.c.b16 %v2113, %v2112
        %v2124 = vpack.c.b16 %v2115, %v2114
        %v2125 = vpack.c.b16 %v2117, %v2116
        %2134 = vmatpush.bf16.msra.mxu0 %v2125
        %2135 = vmatpush.bf16.msra.mxu0 %v2124
        %2136 = vmatpush.bf16.msra.mxu0 %v2123
        %2137 = vmatpush.bf16.msra.mxu0 %v2122
        %2138 = vmatpush.bf16.msra.mxu0 %v2121
        %2139 = vmatpush.bf16.msra.mxu0 %v2120
        %2140 = vmatpush.bf16.msra.mxu0 %v2119
        %2141 = vmatpush.bf16.msra.mxu0 %v2118
        %2142 = vmatmul.bf16.gmra.mxu0 %v2084
        %v2143 = vpop.f32.mrf.mxu0
        %v2144 = vadd.f32 0.0, %v2143
        %v2145 = vpop.f32.mrf.mxu0
        %2146 = vdwg.mxu0
        %v2163 = vunpack.c.l.b16 %v2045
        %v2164 = vunpack.c.l.b16 %v2046
        %v2165 = vunpack.c.l.b16 %v2047
        %v2166 = vunpack.c.l.b16 %v2048
        %v2167 = vunpack.c.l.b16 %v2049
        %v2168 = vunpack.c.l.b16 %v2050
        %v2169 = vunpack.c.l.b16 %v2051
        %v2170 = vunpack.c.l.b16 %v2052
        %v2171 = vunpack.c.l.b16 %v2053
        %v2172 = vunpack.c.l.b16 %v2054
        %v2173 = vunpack.c.l.b16 %v2055
        %v2174 = vunpack.c.l.b16 %v2056
        %v2175 = vunpack.c.l.b16 %v2057
        %v2176 = vunpack.c.l.b16 %v2058
        %v2177 = vunpack.c.l.b16 %v2059
        %v2178 = vunpack.c.l.b16 %v2060
        %v2179 = vpack.c.b16 %v2164, %v2163
        %v2180 = vpack.c.b16 %v2166, %v2165
        %v2181 = vpack.c.b16 %v2168, %v2167
        %v2182 = vpack.c.b16 %v2170, %v2169
        %v2183 = vpack.c.b16 %v2172, %v2171
        %v2184 = vpack.c.b16 %v2174, %v2173
        %v2185 = vpack.c.b16 %v2176, %v2175
        %v2186 = vpack.c.b16 %v2178, %v2177
        %2195 = vmatpush.bf16.msra.mxu0 %v2186
        %2196 = vmatpush.bf16.msra.mxu0 %v2185
        %2197 = vmatpush.bf16.msra.mxu0 %v2184
        %2198 = vmatpush.bf16.msra.mxu0 %v2183
        %2199 = vmatpush.bf16.msra.mxu0 %v2182
        %2200 = vmatpush.bf16.msra.mxu0 %v2181
        %2201 = vmatpush.bf16.msra.mxu0 %v2180
        %2202 = vmatpush.bf16.msra.mxu0 %v2179
        %2203 = vmatmul.bf16.gmra.mxu0 %v2043
        %v2204 = vpop.f32.mrf.mxu0
        %v2205 = vadd.f32 %v2144, %v2204
        %v2206 = vpop.f32.mrf.mxu0
        %2207 = vdwg.mxu0
        %s2208 = scalar_lea.vmem %s9, 128
        %v2209 = vld [vmem:[%s2208] sm:$0xf]
        %v2210 = vld [vmem:[%s2208 + $0x4] sm:$0xf]
        %v2211 = vld [vmem:[%s2208 + $0x8] sm:$0xf]
        %v2212 = vld [vmem:[%s2208 + $0xc] sm:$0xf]
        %v2213 = vld [vmem:[%s2208 + $0x10] sm:$0xf]
        %v2214 = vld [vmem:[%s2208 + $0x14] sm:$0xf]
        %v2215 = vld [vmem:[%s2208 + $0x18] sm:$0xf]
        %v2216 = vld [vmem:[%s2208 + $0x1c] sm:$0xf]
        %v2217 = vld [vmem:[%s2208 + $0x20] sm:$0xf]
        %v2218 = vld [vmem:[%s2208 + $0x24] sm:$0xf]
        %v2219 = vld [vmem:[%s2208 + $0x28] sm:$0xf]
        %v2220 = vld [vmem:[%s2208 + $0x2c] sm:$0xf]
        %v2221 = vld [vmem:[%s2208 + $0x30] sm:$0xf]
        %v2222 = vld [vmem:[%s2208 + $0x34] sm:$0xf]
        %v2223 = vld [vmem:[%s2208 + $0x38] sm:$0xf]
        %v2224 = vld [vmem:[%s2208 + $0x3c] sm:$0xf]
        %v2226 = vrot.slane %v2044, 1
        %v2244 = vunpack.c.l.b16 %v2209
        %v2245 = vunpack.c.l.b16 %v2210
        %v2246 = vunpack.c.l.b16 %v2211
        %v2247 = vunpack.c.l.b16 %v2212
        %v2248 = vunpack.c.l.b16 %v2213
        %v2249 = vunpack.c.l.b16 %v2214
        %v2250 = vunpack.c.l.b16 %v2215
        %v2251 = vunpack.c.l.b16 %v2216
        %v2252 = vunpack.c.l.b16 %v2217
        %v2253 = vunpack.c.l.b16 %v2218
        %v2254 = vunpack.c.l.b16 %v2219
        %v2255 = vunpack.c.l.b16 %v2220
        %v2256 = vunpack.c.l.b16 %v2221
        %v2257 = vunpack.c.l.b16 %v2222
        %v2258 = vunpack.c.l.b16 %v2223
        %v2259 = vunpack.c.l.b16 %v2224
        %v2260 = vpack.c.b16 %v2245, %v2244
        %v2261 = vpack.c.b16 %v2247, %v2246
        %v2262 = vpack.c.b16 %v2249, %v2248
        %v2263 = vpack.c.b16 %v2251, %v2250
        %v2264 = vpack.c.b16 %v2253, %v2252
        %v2265 = vpack.c.b16 %v2255, %v2254
        %v2266 = vpack.c.b16 %v2257, %v2256
        %v2267 = vpack.c.b16 %v2259, %v2258
        %2276 = vmatpush.bf16.msra.mxu0 %v2267
        %2277 = vmatpush.bf16.msra.mxu0 %v2266
        %2278 = vmatpush.bf16.msra.mxu0 %v2265
        %2279 = vmatpush.bf16.msra.mxu0 %v2264
        %2280 = vmatpush.bf16.msra.mxu0 %v2263
        %2281 = vmatpush.bf16.msra.mxu0 %v2262
        %2282 = vmatpush.bf16.msra.mxu0 %v2261
        %2283 = vmatpush.bf16.msra.mxu0 %v2260
        %2284 = vmatmul.bf16.gmra.mxu0 %v2226
        %v2285 = vpop.f32.mrf.mxu0
        %v2286 = vadd.f32 0.0, %v2285
        %v2287 = vpop.f32.mrf.mxu0
        %2288 = vdwg.mxu0
        %v2289 = vadd.f32 %v2205, %v2286
        %v2290 = vld [vmem:[%s10] sm:$0x1]
        %v2292 = vperm.slane %v2290, 0
        %v2294 = vadd.f32 %v2289, %v2292
        %v2295 = vmax.f32 %v2294, 0.0
        %v2296 = vpack.c.bf16 %v2295, %v2295
        %v2297 = vld [vmem:[%s11] sm:$0xf]
        %v2298 = vld [vmem:[%s11 + $0x4] sm:$0xf]
        %v2301 = vunpack.c.l.b16 %v2297
        %v2302 = vunpack.c.l.b16 %v2298
        %v2303 = vpack.c.b16 %v2302, %v2301
        %vm2304 = vcmask 64512
        %v2306 = vsel %vm2304, %v2303, 0
        %vm2308 = vcmask 1043456
        %v2310 = vsel %vm2308, %v2296, 0
        %2312 = vmatpush.bf16.msra.mxu0 0
        %2313 = vmatpush.bf16.msra.mxu0 0
        %2314 = vmatpush.bf16.msra.mxu0 0
        %2315 = vmatpush.bf16.msra.mxu0 0
        %2316 = vmatpush.bf16.msra.mxu0 0
        %2317 = vmatpush.bf16.msra.mxu0 0
        %2318 = vmatpush.bf16.msra.mxu0 0
        %2319 = vmatpush.bf16.msra.mxu0 %v2310
        %2320 = vmatmul.bf16.gmra.mxu0 %v2306
        %v2321 = vpop.f32.mrf.mxu0
        %v2322 = vadd.f32 0.0, %v2321
        %v2323 = vpop.f32.mrf.mxu0
        %v2324 = vadd.f32 0.0, %v2323
        %2325 = vdwg.mxu0
        %v2326 = vmax.f32 %v2322, %v2324
        %v2327 = vpack.c.bf16 %v2326, %v2326
        %v2328 = vld [vmem:[%s12] sm:$0xff]
        %v2329 = vld [vmem:[%s12 + $0x8] sm:$0xff]
        %v2330 = vld [vmem:[%s12 + $0x10] sm:$0xff]
        %v2331 = vld [vmem:[%s12 + $0x18] sm:$0xff]
        %v2336 = vunpack.c.l.b16 %v2328
        %v2337 = vunpack.c.h.b16 %v2328
        %v2338 = vunpack.c.l.b16 %v2329
        %v2339 = vunpack.c.h.b16 %v2329
        %v2340 = vunpack.c.l.b16 %v2330
        %v2341 = vunpack.c.h.b16 %v2330
        %v2342 = vunpack.c.l.b16 %v2331
        %v2343 = vunpack.c.h.b16 %v2331
        %v2344 = vpack.c.b16 %v2338, %v2336
        %v2345 = vpack.c.b16 %v2339, %v2337
        %v2346 = vpack.c.b16 %v2342, %v2340
        %v2347 = vpack.c.b16 %v2343, %v2341
        %vm2352 = vcmask 261120
        %v2354 = vsel %vm2352, %v2327, 0
        %2356 = vmatpush.bf16.msra.mxu0 0
        %2357 = vmatpush.bf16.msra.mxu0 0
        %2358 = vmatpush.bf16.msra.mxu0 0
        %2359 = vmatpush.bf16.msra.mxu0 0
        %2360 = vmatpush.bf16.msra.mxu0 0
        %2361 = vmatpush.bf16.msra.mxu0 0
        %2362 = vmatpush.bf16.msra.mxu0 %v2346
        %2363 = vmatpush.bf16.msra.mxu0 %v2344
        %2364 = vmatmul.bf16.gmra.mxu0 %v2354
        %v2365 = vpop.f32.mrf.mxu0
        %v2366 = vadd.f32 0.0, %v2365
        %v2367 = vpop.f32.mrf.mxu0
        %2368 = vdwg.mxu0
        %2369 = vmatpush.bf16.msra.mxu0 0
        %2370 = vmatpush.bf16.msra.mxu0 0
        %2371 = vmatpush.bf16.msra.mxu0 0
        %2372 = vmatpush.bf16.msra.mxu0 0
        %2373 = vmatpush.bf16.msra.mxu0 0
        %2374 = vmatpush.bf16.msra.mxu0 0
        %2375 = vmatpush.bf16.msra.mxu0 %v2347
        %2376 = vmatpush.bf16.msra.mxu0 %v2345
        %2377 = vmatmul.bf16.gmra.mxu0 %v2354
        %v2378 = vpop.f32.mrf.mxu0
        %v2379 = vadd.f32 0.0, %v2378
        %v2380 = vpop.f32.mrf.mxu0
        %2381 = vdwg.mxu0
        %v2382 = vmax.f32 %v2366, %v2379
        %v2383 = vpack.c.bf16 %v2382, %v2382
        %v2384 = vld [vmem:[%s13] sm:$0xf]
        %v2385 = vld [vmem:[%s13 + $0x4] sm:$0xf]
        %v2386 = vld [vmem:[%s13 + $0x8] sm:$0xf]
        %v2387 = vld [vmem:[%s13 + $0xc] sm:$0xf]
        %v2388 = vld [vmem:[%s13 + $0x10] sm:$0xf]
        %v2389 = vld [vmem:[%s13 + $0x14] sm:$0xf]
        %v2390 = vld [vmem:[%s13 + $0x18] sm:$0xf]
        %v2391 = vld [vmem:[%s13 + $0x1c] sm:$0xf]
        %v2392 = vld [vmem:[%s13 + $0x20] sm:$0xf]
        %v2393 = vld [vmem:[%s13 + $0x24] sm:$0xf]
        %v2394 = vld [vmem:[%s13 + $0x28] sm:$0xf]
        %v2395 = vld [vmem:[%s13 + $0x2c] sm:$0xf]
        %v2396 = vld [vmem:[%s13 + $0x30] sm:$0xf]
        %v2397 = vld [vmem:[%s13 + $0x34] sm:$0xf]
        %v2398 = vld [vmem:[%s13 + $0x38] sm:$0xf]
        %v2399 = vld [vmem:[%s13 + $0x3c] sm:$0xf]
        %v2416 = vunpack.c.l.b16 %v2384
        %v2417 = vunpack.c.l.b16 %v2385
        %v2418 = vunpack.c.l.b16 %v2386
        %v2419 = vunpack.c.l.b16 %v2387
        %v2420 = vunpack.c.l.b16 %v2388
        %v2421 = vunpack.c.l.b16 %v2389
        %v2422 = vunpack.c.l.b16 %v2390
        %v2423 = vunpack.c.l.b16 %v2391
        %v2424 = vunpack.c.l.b16 %v2392
        %v2425 = vunpack.c.l.b16 %v2393
        %v2426 = vunpack.c.l.b16 %v2394
        %v2427 = vunpack.c.l.b16 %v2395
        %v2428 = vunpack.c.l.b16 %v2396
        %v2429 = vunpack.c.l.b16 %v2397
        %v2430 = vunpack.c.l.b16 %v2398
        %v2431 = vunpack.c.l.b16 %v2399
        %v2432 = vpack.c.b16 %v2417, %v2416
        %v2433 = vpack.c.b16 %v2419, %v2418
        %v2434 = vpack.c.b16 %v2421, %v2420
        %v2435 = vpack.c.b16 %v2423, %v2422
        %v2436 = vpack.c.b16 %v2425, %v2424
        %v2437 = vpack.c.b16 %v2427, %v2426
        %v2438 = vpack.c.b16 %v2429, %v2428
        %v2439 = vpack.c.b16 %v2431, %v2430
        %2448 = vmatpush.bf16.msra.mxu0 %v2439
        %2449 = vmatpush.bf16.msra.mxu0 %v2438
        %2450 = vmatpush.bf16.msra.mxu0 %v2437
        %2451 = vmatpush.bf16.msra.mxu0 %v2436
        %2452 = vmatpush.bf16.msra.mxu0 %v2435
        %2453 = vmatpush.bf16.msra.mxu0 %v2434
        %2454 = vmatpush.bf16.msra.mxu0 %v2433
        %2455 = vmatpush.bf16.msra.mxu0 %v2432
        %2456 = vmatmul.bf16.gmra.mxu0 %v2383
        %v2457 = vpop.f32.mrf.mxu0
        %v2458 = vadd.f32 0.0, %v2457
        %v2459 = vpop.f32.mrf.mxu0
        %2460 = vdwg.mxu0
        %v2461 = vld [vmem:[%s14] sm:$0x1]
        %v2462 = vadd.f32 %v2461, %v2458
        %2464 = vst [vmem:[#allocation1] sm:$0xff] %v2458
        %s2465 = scalar_lea.vmem [#allocation1], 1
        %v2466 = vld [vmem:[%s2465] ss:$9 sm:$0xff]
        %2467 = vrot.lane.b32.xlu0 %v2466, 96
        %v2468 = vpop.permute.xlu0 %2467
        %v2470 = vadd.f32 %v2462, %v2468
        %2471 = vst [vmem:[#allocation1] sm:$0xff] %v2458
        %s2472 = scalar_lea.vmem [#allocation1], 2
        %v2473 = vld [vmem:[%s2472] ss:$9 sm:$0xff]
        %2474 = vrot.lane.b32.xlu0 %v2473, 64
        %v2475 = vpop.permute.xlu0 %2474
        %v2477 = vadd.f32 %v2470, %v2475
        %2478 = vst [vmem:[#allocation1] sm:$0xff] %v2458
        %s2479 = scalar_lea.vmem [#allocation1], 3
        %v2480 = vld [vmem:[%s2479] ss:$9 sm:$0xff]
        %2481 = vrot.lane.b32.xlu0 %v2480, 32
        %v2482 = vpop.permute.xlu0 %2481
        %v2484 = vadd.f32 %v2477, %v2482
        %vm2485 = vcmask 253952
        %2486 = vst.msk [vmem:[%s486] sm:$0x1] %vm2485, %v2484
        %s2487 = sand.u32 %s357, 1
        %s2488 = scalar_lea.sflag [#allocation3], %s2487
        %s2489 = sand.u32 %s357, 1
        %s2490 = scalar_lea.vmem [#allocation2], %s2489
        // Predicated region
        $region81: #{img_enc_forward.1} parent=79 // pred_check
          %p2491 = pneg %p367
        $region82: #{img_enc_forward.1} parent=79 // pred_check_branch
          %2493 = sbr.rel (%p2491) target = $region84
        $region83: #{img_enc_forward.1} parent=79 // pred_region
          %2495 = vsyncadd %s2488, 0
          %s2496 = scalar_lea.hbm %s15, %s29
          %s2498 = sshll.u32 %s2490, 4
          %s2499 = int_to_ptr.vmem [resolvable:$true] %s2498
          %s2500 = sshll.u32 %s2496, 4
          %s2501 = int_to_ptr.hbm [resolvable:$true] %s2500
          %2503 = dma.vmem_to_hbm [thread:$0]  %s2499, 16, %s2501, %s2488
        $region84: #{img_enc_forward.1} parent=79 // pred_fallthru
          _
      $region80: #{img_enc_forward.1} parent=5 // pred_fallthru
        _
      %p2504 = scmp.le.s32.totalorder 2, %s24
      // Predicated region
      $region85: #{img_enc_forward.1} parent=5 // pred_check
        %p2505 = pneg %p2504
      $region86: #{img_enc_forward.1} parent=5 // pred_check_branch
        %2507 = sbr.rel (%p2505) target = $region88
      $region87: #{img_enc_forward.1} parent=5 // pred_region
        %s2508 = ssub.s32 %s24, 2
        // Predicated region
        $region89: #{img_enc_forward.1} parent=87 // pred_check
          %p2509 = pneg %p373
        $region90: #{img_enc_forward.1} parent=87 // pred_check_branch
          %2511 = sbr.rel (%p2509) target = $region92
        $region91: #{img_enc_forward.1} parent=87 // pred_region
          %s2512 = sand.u32 %s358, 1
          %s2513 = scalar_lea.sflag [#allocation3], %s2512
          %s2514 = sand.u32 %s358, 1
          %s2515 = scalar_lea.vmem [#allocation2], %s2514
          %2517 = dma.done %s2513, 16
        $region92: #{img_enc_forward.1} parent=87 // pred_fallthru
          _
      $region88: #{img_enc_forward.1} parent=5 // pred_fallthru
        _
    $region6: #{img_enc_forward.1} parent=1 // loop_footer
      %s28 = sadd.s32 1, %s24
    $region7: #{img_enc_forward.1} parent=1 // loop_footer_branch
      %23 = sbr.rel target = $region3
    $region8: #{img_enc_forward.1} parent=1 // loop_exit
      _
    %2518 = vsyncpa [#allocation3], 1
    %s2519 = scalar_lea.sflag [#allocation3], 1
    %2520 = vsyncpa %s2519, 1

</llo_original>
